<compile_context>
chip_gen: v7x
topology: tpu7x:2x2x1
jax: 0.10.0
libtpu: 0.0.40
codegen_flags: <defaults>
</compile_context>

<pallas_src>
import numpy as np
import jax
import jax.numpy as jnp
from jax.experimental import pallas as pl
from jax.experimental.pallas import tpu as pltpu

# ----------------------------- problem sizes -------------------------------
C = 32          # feature channels of teacher / student / autoencoder outputs
FH = FW = 16    # feature-map spatial size (small, per instructions)
HW = FH * FW
OUT = 256       # CSAD hard-codes 256x256 output resolution

_VMEM = pl.BlockSpec(memory_space=pltpu.MemorySpace.VMEM)
_SMEM = pl.BlockSpec(memory_space=pltpu.MemorySpace.SMEM)
_ANY = pl.BlockSpec(memory_space=pl.ANY)


# ----------------------------- fused kernel ---------------------------------
def _csad_fused_kernel(q_ref, feats_ref, mstd_ref, wh_ref, wct_ref, patch_hbm,
                       map_ref, score_ref,
                       x16_ref, patch_vmem, dma_sem):
    """Fused LGST map + quantile rescale + separable bilinear upsample + fusion.

    q_ref     : (4,)       f32 SMEM  [q_st_start, q_st_end, q_ae_start, q_ae_end]
    feats_ref : (4C, HW)   f32 VMEM  packed [teacher; st_student; ae_student; autoenc]
    mstd_ref  : (C, 2)     f32 VMEM  col 0 = teacher_mean, col 1 = teacher_std
    wh_ref    : (OUT, FH)  f32 VMEM  bilinear row weights
    wct_ref   : (FW, OUT)  f32 VMEM  bilinear column weights, already transposed
    patch_hbm : (OUT, OUT) f32 HBM   patch-histogram anomaly map (manual DMA)
    map_ref   : (OUT, OUT) f32 VMEM  anomaly_map output
    score_ref : (1, 1)     f32 SMEM  anomaly_score output
    """
    # Prefetch the patch-histogram map while the LGST branch computes.
    patch_cp = pltpu.make_async_copy(patch_hbm, patch_vmem, dma_sem)
    patch_cp.start()

    # --- quantile guard math (scalar unit; moved in-kernel from the wrapper) ---
    q_st_start = q_ref[0]
    q_st_end = q_ref[1]
    q_ae_start = q_ref[2]
    q_ae_end = q_ref[3]
    d_st = q_st_end - q_st_start
    d_ae = q_ae_end - q_ae_start
    # Keep the guard in select form (matches torch's `> 1e-6` branch); the
    # unselected branch may compute inf for a ~0 span — discarded by the select.
    st_scale = jnp.where(d_st > 1e-6, 0.1 / d_st, 1.0)
    st_off = jnp.where(d_st > 1e-6, -0.1 * q_st_start / d_st, 0.0)
    ae_scale = jnp.where(d_ae > 1e-6, 0.1 / d_ae, 1.0)
    ae_off = jnp.where(d_ae > 1e-6, -0.1 * q_ae_start / d_ae, 0.0)

    # --- LGST channel-MSE maps (divides -> EUP reciprocals) ---
    mean = mstd_ref[:, 0:1]                                    # (C, 1)
    inv_std = pl.reciprocal(mstd_ref[:, 1:2], approx=True)     # (C, 1)
    t = (feats_ref[0:C, :] - mean) * inv_std                   # (C, HW)
    d1 = t - feats_ref[C:2 * C, :]                             # teacher - st_student
    d2 = feats_ref[3 * C:4 * C, :] - feats_ref[2 * C:3 * C, :] # autoenc - ae_student
    map_st = jnp.mean(d1 * d1, axis=0, keepdims=True)          # (1, HW)
    map_ae = jnp.mean(d2 * d2, axis=0, keepdims=True)          # (1, HW)

    # Quantile normalization folded into scale/offset FMAs.
    m = (st_scale * map_st + st_off) + (ae_scale * map_ae + ae_off)  # (1, HW)

    # --- (1, HW) -> (FH, FW) via 16 static row stores into a tiny scratch ---
    # (avoids an in-kernel reshape/relayout; touches ~1 KiB)
    for r in range(FH):
        x16_ref[r:r + 1, :] = m[:, r * FW:(r + 1) * FW]
    x16 = x16_ref[...]                                         # (FH, FW)

    # --- separable bilinear upsample: two tiny MXU matmuls ---
    tmp = jnp.dot(wh_ref[...], x16, preferred_element_type=jnp.float32)   # (OUT, FW)
    lgst = jnp.dot(tmp, wct_ref[...], preferred_element_type=jnp.float32) # (OUT, OUT)

    # --- fuse with patch-histogram map + anomaly score (consumers adjacent) ---
    patch_cp.wait()
    p = patch_vmem[...]
    map_ref[...] = lgst + 0.15 * p
    score_ref[0, 0] = jnp.max(lgst) + jnp.max(p)


# ----------------------------- wrapper ---------------------------------------
@jax.jit
def csad_forward(q, feats, mstd, wh, wct, patchhist_map):
    cost = pl.CostEstimate(
        flops=(2 * OUT * FH * FW            # wh @ x16
               + 2 * OUT * FW * OUT         # tmp @ wc^T
               + 8 * 4 * C * HW             # channel-MSE elementwise
               + 3 * OUT * OUT),            # fuse + maxes
        transcendentals=C,                   # per-channel reciprocals
        bytes_accessed=4 * (4 * C * HW + 2 * C + OUT * FH + FW * OUT
                            + 2 * OUT * OUT + 4 + 1),
    )
    anomaly_map, score = pl.pallas_call(
        _csad_fused_kernel,
        out_shape=(jax.ShapeDtypeStruct((OUT, OUT), jnp.float32),
                   jax.ShapeDtypeStruct((1, 1), jnp.float32)),
        in_specs=[_SMEM,    # q (quantiles)
                  _VMEM,    # packed features (4C, HW)
                  _VMEM,    # mean/std (C, 2)
                  _VMEM,    # wh (OUT, FH)
                  _VMEM,    # wc^T (FW, OUT)
                  _ANY],    # patchhist_map (manual DMA)
        out_specs=(_VMEM, _SMEM),
        scratch_shapes=[pltpu.VMEM((FH, FW), jnp.float32),
                        pltpu.VMEM((OUT, OUT), jnp.float32),
                        pltpu.SemaphoreType.DMA(())],
        cost_estimate=cost,
    )(q, feats, mstd, wh, wct, patchhist_map)
    return anomaly_map, score[0, 0]


# ----------------------------- host-side glue --------------------------------
def _bilinear_matrix(in_size, out_size):
    """PyTorch F.interpolate(mode='bilinear', align_corners=False) weights."""
    scale = in_size / out_size
    i = np.arange(out_size, dtype=np.float64)
    src = (i + 0.5) * scale - 0.5
    src = np.maximum(src, 0.0)
    x0 = np.minimum(np.floor(src).astype(np.int64), in_size - 1)
    x1 = np.minimum(x0 + 1, in_size - 1)
    lam = src - x0
    w = np.zeros((out_size, in_size), dtype=np.float32)
    w[np.arange(out_size), x0] += (1.0 - lam).astype(np.float32)
    w[np.arange(out_size), x1] += lam.astype(np.float32)
    return w


def _reference(feats, mstd, q, wh, wc, patchhist_map):
    """Pure-JAX reference of the same math (torch-faithful, incl. the guard)."""
    teacher = feats[0:C]
    st_student = feats[C:2 * C]
    ae_student = feats[2 * C:3 * C]
    autoenc = feats[3 * C:4 * C]
    t_mean = mstd[:, 0:1]
    t_std = mstd[:, 1:2]
    t = (teacher - t_mean) / t_std
    map_st = jnp.mean((t - st_student) ** 2, axis=0, keepdims=True)
    map_ae = jnp.mean((autoenc - ae_student) ** 2, axis=0, keepdims=True)
    d_st = q[1] - q[0]
    d_ae = q[3] - q[2]
    map_st = jnp.where(d_st > 1e-6, 0.1 * (map_st - q[0]) / d_st, map_st)
    map_ae = jnp.where(d_ae > 1e-6, 0.1 * (map_ae - q[2]) / d_ae, map_ae)
    x = (map_st + map_ae).reshape(FH, FW)
    lgst = wh @ x @ wc.T
    amap = lgst + 0.15 * patchhist_map
    score = jnp.max(lgst) + jnp.max(patchhist_map)
    return amap, score


if __name__ == "__main__":
    key = jax.random.PRNGKey(0)
    ks = jax.random.split(key, 4)

    # TODO(synk): teacher/student/autoencoder/encoder are checkpoint-loaded
    # networks in the original CSAD; their outputs are stood in here by a
    # deterministic synthetic packed feature tensor of matching layout:
    # rows [0:C]=teacher, [C:2C]=st_student, [2C:3C]=ae_student, [3C:4C]=autoenc.
    feats = jax.random.normal(ks[0], (4 * C, HW), jnp.float32)
    t_mean = jax.random.normal(ks[1], (C, 1), jnp.float32)
    t_std = jax.random.uniform(ks[2], (C, 1), jnp.float32, 0.5, 1.5)
    mstd = jnp.concatenate([t_mean, t_std], axis=1)            # (C, 2)
    q = jnp.array([0.05, 0.75, 0.03, 0.60], jnp.float32)       # st_start/end, ae_start/end

    # TODO(synk): the patch-histogram branch (segmentor + vis_histogram over
    # normal_hists/normal_patchhists/normal_segmaps .npy data) has no
    # in-script equivalent; its output map is a synthetic input here.
    patchhist_map = jnp.abs(jax.random.normal(ks[3], (OUT, OUT), jnp.float32))

    wh_np = _bilinear_matrix(FH, OUT)                          # (OUT, FH)
    wc_np = _bilinear_matrix(FW, OUT)                          # (OUT, FW)
    wh = jnp.asarray(wh_np)
    wc = jnp.asarray(wc_np)
    wct = jnp.asarray(np.ascontiguousarray(wc_np.T))           # (FW, OUT)

    amap, ascore = csad_forward(q, feats, mstd, wh, wct, patchhist_map)
    jax.block_until_ready((amap, ascore))

    ref_map, ref_score = _reference(feats, mstd, q, wh, wc, patchhist_map)
    assert amap.shape == (OUT, OUT) and amap.dtype == jnp.float32
    # Tolerance leaves a small margin for the EUP approximate reciprocal of std.
    np.testing.assert_allclose(np.asarray(amap), np.asarray(ref_map),
                               rtol=2e-3, atol=2e-3)
    np.testing.assert_allclose(float(ascore), float(ref_score),
                               rtol=2e-3, atol=2e-3)
    print("KERNEL_OK")
</pallas_src>

<mosaic_0001>
module attributes {stable_mosaic.version = 11 : i64} {
  func.func @_csad_fused_kernel(%arg0: memref<4xf32, #tpu.memory_space<smem>>, %arg1: memref<128x256xf32, #tpu.memory_space<vmem>>, %arg2: memref<32x2xf32, #tpu.memory_space<vmem>>, %arg3: memref<256x16xf32, #tpu.memory_space<vmem>>, %arg4: memref<16x256xf32, #tpu.memory_space<vmem>>, %arg5: memref<256x256xf32, #tpu.memory_space<any>>, %arg6: memref<256x256xf32, #tpu.memory_space<vmem>>, %arg7: memref<1x1xf32, #tpu.memory_space<smem>>, %arg8: memref<16x16xf32, #tpu.memory_space<vmem>>, %arg9: memref<256x256xf32, #tpu.memory_space<vmem>>, %arg10: memref<!tpu.dma_semaphore, #tpu.memory_space<semaphore_mem>>) attributes {dimension_semantics = [], scalar_prefetch = 0 : i64, scratch_operands = 3 : i64, tpu.core_type = #tpu.core_type<tc>} {
    tpu.enqueue_dma source(%arg5 : memref<256x256xf32, #tpu.memory_space<any>>) target(%arg9 : memref<256x256xf32, #tpu.memory_space<vmem>>) target_semaphore(%arg10 : memref<!tpu.dma_semaphore, #tpu.memory_space<semaphore_mem>>)
    %c0 = arith.constant 0 : index
    %0 = memref.load %arg0[%c0] : memref<4xf32, #tpu.memory_space<smem>>
    %c1 = arith.constant 1 : index
    %1 = memref.load %arg0[%c1] : memref<4xf32, #tpu.memory_space<smem>>
    %c2 = arith.constant 2 : index
    %2 = memref.load %arg0[%c2] : memref<4xf32, #tpu.memory_space<smem>>
    %c3 = arith.constant 3 : index
    %3 = memref.load %arg0[%c3] : memref<4xf32, #tpu.memory_space<smem>>
    %4 = arith.subf %1, %0 : f32
    %5 = arith.subf %3, %2 : f32
    %cst = arith.constant 9.99999997E-7 : f32
    %6 = arith.cmpf ogt, %4, %cst : f32
    %cst_0 = arith.constant 1.000000e-01 : f32
    %7 = arith.divf %cst_0, %4 : f32
    %cst_1 = arith.constant 1.000000e+00 : f32
    %8 = arith.select %6, %7, %cst_1 : f32
    %cst_2 = arith.constant 9.99999997E-7 : f32
    %9 = arith.cmpf ogt, %4, %cst_2 : f32
    %cst_3 = arith.constant -1.000000e-01 : f32
    %10 = arith.mulf %cst_3, %0 : f32
    %11 = arith.divf %10, %4 : f32
    %cst_4 = arith.constant 0.000000e+00 : f32
    %12 = arith.select %9, %11, %cst_4 : f32
    %cst_5 = arith.constant 9.99999997E-7 : f32
    %13 = arith.cmpf ogt, %5, %cst_5 : f32
    %cst_6 = arith.constant 1.000000e-01 : f32
    %14 = arith.divf %cst_6, %5 : f32
    %cst_7 = arith.constant 1.000000e+00 : f32
    %15 = arith.select %13, %14, %cst_7 : f32
    %cst_8 = arith.constant 9.99999997E-7 : f32
    %16 = arith.cmpf ogt, %5, %cst_8 : f32
    %cst_9 = arith.constant -1.000000e-01 : f32
    %17 = arith.mulf %cst_9, %2 : f32
    %18 = arith.divf %17, %5 : f32
    %cst_10 = arith.constant 0.000000e+00 : f32
    %19 = arith.select %16, %18, %cst_10 : f32
    %c0_11 = arith.constant 0 : index
    %c0_12 = arith.constant 0 : index
    %20 = vector.load %arg2[%c0_11, %c0_12] : memref<32x2xf32, #tpu.memory_space<vmem>>, vector<32x1xf32>
    %c0_13 = arith.constant 0 : index
    %c1_14 = arith.constant 1 : index
    %21 = vector.load %arg2[%c0_13, %c1_14] : memref<32x2xf32, #tpu.memory_space<vmem>>, vector<32x1xf32>
    %22 = tpu.reciprocal %21 {approx = true} : vector<32x1xf32> -> vector<32x1xf32>
    %c0_15 = arith.constant 0 : index
    %c0_16 = arith.constant 0 : index
    %23 = vector.load %arg1[%c0_15, %c0_16] : memref<128x256xf32, #tpu.memory_space<vmem>>, vector<32x256xf32>
    %24 = vector.broadcast %20 : vector<32x1xf32> to vector<32x256xf32>
    %25 = arith.subf %23, %24 : vector<32x256xf32>
    %26 = vector.broadcast %22 : vector<32x1xf32> to vector<32x256xf32>
    %27 = arith.mulf %25, %26 : vector<32x256xf32>
    %c32 = arith.constant 32 : index
    %c0_17 = arith.constant 0 : index
    %28 = vector.load %arg1[%c32, %c0_17] : memref<128x256xf32, #tpu.memory_space<vmem>>, vector<32x256xf32>
    %29 = arith.subf %27, %28 : vector<32x256xf32>
    %c96 = arith.constant 96 : index
    %c0_18 = arith.constant 0 : index
    %30 = vector.load %arg1[%c96, %c0_18] : memref<128x256xf32, #tpu.memory_space<vmem>>, vector<32x256xf32>
    %c64 = arith.constant 64 : index
    %c0_19 = arith.constant 0 : index
    %31 = vector.load %arg1[%c64, %c0_19] : memref<128x256xf32, #tpu.memory_space<vmem>>, vector<32x256xf32>
    %32 = arith.subf %30, %31 : vector<32x256xf32>
    %33 = arith.mulf %29, %29 : vector<32x256xf32>
    %cst_20 = arith.constant dense<0.000000e+00> : vector<256xf32>
    %34 = vector.multi_reduction <add>, %33, %cst_20 [0] : vector<32x256xf32> to vector<256xf32>
    %35 = vector.shape_cast %34 : vector<256xf32> to vector<1x256xf32>
    %cst_21 = arith.constant 3.200000e+01 : f32
    %36 = vector.broadcast %cst_21 : f32 to vector<1x256xf32>
    %37 = arith.divf %35, %36 : vector<1x256xf32>
    %38 = arith.mulf %32, %32 : vector<32x256xf32>
    %cst_22 = arith.constant dense<0.000000e+00> : vector<256xf32>
    %39 = vector.multi_reduction <add>, %38, %cst_22 [0] : vector<32x256xf32> to vector<256xf32>
    %40 = vector.shape_cast %39 : vector<256xf32> to vector<1x256xf32>
    %cst_23 = arith.constant 3.200000e+01 : f32
    %41 = vector.broadcast %cst_23 : f32 to vector<1x256xf32>
    %42 = arith.divf %40, %41 : vector<1x256xf32>
    %43 = vector.broadcast %8 : f32 to vector<1x256xf32>
    %44 = arith.mulf %43, %37 : vector<1x256xf32>
    %45 = vector.broadcast %12 : f32 to vector<1x256xf32>
    %46 = arith.addf %44, %45 : vector<1x256xf32>
    %47 = vector.broadcast %15 : f32 to vector<1x256xf32>
    %48 = arith.mulf %47, %42 : vector<1x256xf32>
    %49 = vector.broadcast %19 : f32 to vector<1x256xf32>
    %50 = arith.addf %48, %49 : vector<1x256xf32>
    %51 = arith.addf %46, %50 : vector<1x256xf32>
    %52 = vector.extract_strided_slice %51 {offsets = [0, 0], sizes = [1, 16], strides = [1, 1]} : vector<1x256xf32> to vector<1x16xf32>
    %c0_24 = arith.constant 0 : index
    %c0_25 = arith.constant 0 : index
    %53 = vector.load %arg8[%c0_24, %c0_25] : memref<16x16xf32, #tpu.memory_space<vmem>>, vector<1x16xf32>
    tpu.vector_store %arg8[%c0_24, %c0_25], %52 {strides = array<i32>} : memref<16x16xf32, #tpu.memory_space<vmem>>, vector<1x16xf32>,
    %54 = vector.extract_strided_slice %51 {offsets = [0, 16], sizes = [1, 16], strides = [1, 1]} : vector<1x256xf32> to vector<1x16xf32>
    %c1_26 = arith.constant 1 : index
    %c0_27 = arith.constant 0 : index
    %55 = vector.load %arg8[%c1_26, %c0_27] : memref<16x16xf32, #tpu.memory_space<vmem>>, vector<1x16xf32>
    tpu.vector_store %arg8[%c1_26, %c0_27], %54 {strides = array<i32>} : memref<16x16xf32, #tpu.memory_space<vmem>>, vector<1x16xf32>,
    %56 = vector.extract_strided_slice %51 {offsets = [0, 32], sizes = [1, 16], strides = [1, 1]} : vector<1x256xf32> to vector<1x16xf32>
    %c2_28 = arith.constant 2 : index
    %c0_29 = arith.constant 0 : index
    %57 = vector.load %arg8[%c2_28, %c0_29] : memref<16x16xf32, #tpu.memory_space<vmem>>, vector<1x16xf32>
    tpu.vector_store %arg8[%c2_28, %c0_29], %56 {strides = array<i32>} : memref<16x16xf32, #tpu.memory_space<vmem>>, vector<1x16xf32>,
    %58 = vector.extract_strided_slice %51 {offsets = [0, 48], sizes = [1, 16], strides = [1, 1]} : vector<1x256xf32> to vector<1x16xf32>
    %c3_30 = arith.constant 3 : index
    %c0_31 = arith.constant 0 : index
    %59 = vector.load %arg8[%c3_30, %c0_31] : memref<16x16xf32, #tpu.memory_space<vmem>>, vector<1x16xf32>
    tpu.vector_store %arg8[%c3_30, %c0_31], %58 {strides = array<i32>} : memref<16x16xf32, #tpu.memory_space<vmem>>, vector<1x16xf32>,
    %60 = vector.extract_strided_slice %51 {offsets = [0, 64], sizes = [1, 16], strides = [1, 1]} : vector<1x256xf32> to vector<1x16xf32>
    %c4 = arith.constant 4 : index
    %c0_32 = arith.constant 0 : index
    %61 = vector.load %arg8[%c4, %c0_32] : memref<16x16xf32, #tpu.memory_space<vmem>>, vector<1x16xf32>
    tpu.vector_store %arg8[%c4, %c0_32], %60 {strides = array<i32>} : memref<16x16xf32, #tpu.memory_space<vmem>>, vector<1x16xf32>,
    %62 = vector.extract_strided_slice %51 {offsets = [0, 80], sizes = [1, 16], strides = [1, 1]} : vector<1x256xf32> to vector<1x16xf32>
    %c5 = arith.constant 5 : index
    %c0_33 = arith.constant 0 : index
    %63 = vector.load %arg8[%c5, %c0_33] : memref<16x16xf32, #tpu.memory_space<vmem>>, vector<1x16xf32>
    tpu.vector_store %arg8[%c5, %c0_33], %62 {strides = array<i32>} : memref<16x16xf32, #tpu.memory_space<vmem>>, vector<1x16xf32>,
    %64 = vector.extract_strided_slice %51 {offsets = [0, 96], sizes = [1, 16], strides = [1, 1]} : vector<1x256xf32> to vector<1x16xf32>
    %c6 = arith.constant 6 : index
    %c0_34 = arith.constant 0 : index
    %65 = vector.load %arg8[%c6, %c0_34] : memref<16x16xf32, #tpu.memory_space<vmem>>, vector<1x16xf32>
    tpu.vector_store %arg8[%c6, %c0_34], %64 {strides = array<i32>} : memref<16x16xf32, #tpu.memory_space<vmem>>, vector<1x16xf32>,
    %66 = vector.extract_strided_slice %51 {offsets = [0, 112], sizes = [1, 16], strides = [1, 1]} : vector<1x256xf32> to vector<1x16xf32>
    %c7 = arith.constant 7 : index
    %c0_35 = arith.constant 0 : index
    %67 = vector.load %arg8[%c7, %c0_35] : memref<16x16xf32, #tpu.memory_space<vmem>>, vector<1x16xf32>
    tpu.vector_store %arg8[%c7, %c0_35], %66 {strides = array<i32>} : memref<16x16xf32, #tpu.memory_space<vmem>>, vector<1x16xf32>,
    %68 = vector.extract_strided_slice %51 {offsets = [0, 128], sizes = [1, 16], strides = [1, 1]} : vector<1x256xf32> to vector<1x16xf32>
    %c8 = arith.constant 8 : index
    %c0_36 = arith.constant 0 : index
    %69 = vector.load %arg8[%c8, %c0_36] : memref<16x16xf32, #tpu.memory_space<vmem>>, vector<1x16xf32>
    tpu.vector_store %arg8[%c8, %c0_36], %68 {strides = array<i32>} : memref<16x16xf32, #tpu.memory_space<vmem>>, vector<1x16xf32>,
    %70 = vector.extract_strided_slice %51 {offsets = [0, 144], sizes = [1, 16], strides = [1, 1]} : vector<1x256xf32> to vector<1x16xf32>
    %c9 = arith.constant 9 : index
    %c0_37 = arith.constant 0 : index
    %71 = vector.load %arg8[%c9, %c0_37] : memref<16x16xf32, #tpu.memory_space<vmem>>, vector<1x16xf32>
    tpu.vector_store %arg8[%c9, %c0_37], %70 {strides = array<i32>} : memref<16x16xf32, #tpu.memory_space<vmem>>, vector<1x16xf32>,
    %72 = vector.extract_strided_slice %51 {offsets = [0, 160], sizes = [1, 16], strides = [1, 1]} : vector<1x256xf32> to vector<1x16xf32>
    %c10 = arith.constant 10 : index
    %c0_38 = arith.constant 0 : index
    %73 = vector.load %arg8[%c10, %c0_38] : memref<16x16xf32, #tpu.memory_space<vmem>>, vector<1x16xf32>
    tpu.vector_store %arg8[%c10, %c0_38], %72 {strides = array<i32>} : memref<16x16xf32, #tpu.memory_space<vmem>>, vector<1x16xf32>,
    %74 = vector.extract_strided_slice %51 {offsets = [0, 176], sizes = [1, 16], strides = [1, 1]} : vector<1x256xf32> to vector<1x16xf32>
    %c11 = arith.constant 11 : index
    %c0_39 = arith.constant 0 : index
    %75 = vector.load %arg8[%c11, %c0_39] : memref<16x16xf32, #tpu.memory_space<vmem>>, vector<1x16xf32>
    tpu.vector_store %arg8[%c11, %c0_39], %74 {strides = array<i32>} : memref<16x16xf32, #tpu.memory_space<vmem>>, vector<1x16xf32>,
    %76 = vector.extract_strided_slice %51 {offsets = [0, 192], sizes = [1, 16], strides = [1, 1]} : vector<1x256xf32> to vector<1x16xf32>
    %c12 = arith.constant 12 : index
    %c0_40 = arith.constant 0 : index
    %77 = vector.load %arg8[%c12, %c0_40] : memref<16x16xf32, #tpu.memory_space<vmem>>, vector<1x16xf32>
    tpu.vector_store %arg8[%c12, %c0_40], %76 {strides = array<i32>} : memref<16x16xf32, #tpu.memory_space<vmem>>, vector<1x16xf32>,
    %78 = vector.extract_strided_slice %51 {offsets = [0, 208], sizes = [1, 16], strides = [1, 1]} : vector<1x256xf32> to vector<1x16xf32>
    %c13 = arith.constant 13 : index
    %c0_41 = arith.constant 0 : index
    %79 = vector.load %arg8[%c13, %c0_41] : memref<16x16xf32, #tpu.memory_space<vmem>>, vector<1x16xf32>
    tpu.vector_store %arg8[%c13, %c0_41], %78 {strides = array<i32>} : memref<16x16xf32, #tpu.memory_space<vmem>>, vector<1x16xf32>,
    %80 = vector.extract_strided_slice %51 {offsets = [0, 224], sizes = [1, 16], strides = [1, 1]} : vector<1x256xf32> to vector<1x16xf32>
    %c14 = arith.constant 14 : index
    %c0_42 = arith.constant 0 : index
    %81 = vector.load %arg8[%c14, %c0_42] : memref<16x16xf32, #tpu.memory_space<vmem>>, vector<1x16xf32>
    tpu.vector_store %arg8[%c14, %c0_42], %80 {strides = array<i32>} : memref<16x16xf32, #tpu.memory_space<vmem>>, vector<1x16xf32>,
    %82 = vector.extract_strided_slice %51 {offsets = [0, 240], sizes = [1, 16], strides = [1, 1]} : vector<1x256xf32> to vector<1x16xf32>
    %c15 = arith.constant 15 : index
    %c0_43 = arith.constant 0 : index
    %83 = vector.load %arg8[%c15, %c0_43] : memref<16x16xf32, #tpu.memory_space<vmem>>, vector<1x16xf32>
    tpu.vector_store %arg8[%c15, %c0_43], %82 {strides = array<i32>} : memref<16x16xf32, #tpu.memory_space<vmem>>, vector<1x16xf32>,
    %c0_44 = arith.constant 0 : index
    %c0_45 = arith.constant 0 : index
    %84 = vector.load %arg8[%c0_44, %c0_45] : memref<16x16xf32, #tpu.memory_space<vmem>>, vector<16x16xf32>
    %c0_46 = arith.constant 0 : index
    %c0_47 = arith.constant 0 : index
    %85 = vector.load %arg3[%c0_46, %c0_47] : memref<256x16xf32, #tpu.memory_space<vmem>>, vector<256x16xf32>
    %cst_48 = arith.constant dense<0.000000e+00> : vector<256x16xf32>
    %86 = tpu.matmul %85, %84, %cst_48 {dimension_numbers = #tpu.dot_dimension_numbers<[1], [0], [0], [1], [0, 0, 1, 1], [], []>} : vector<256x16xf32>, vector<16x16xf32>, vector<256x16xf32> -> vector<256x16xf32>
    %c0_49 = arith.constant 0 : index
    %c0_50 = arith.constant 0 : index
    %87 = vector.load %arg4[%c0_49, %c0_50] : memref<16x256xf32, #tpu.memory_space<vmem>>, vector<16x256xf32>
    %cst_51 = arith.constant dense<0.000000e+00> : vector<256x256xf32>
    %88 = tpu.matmul %86, %87, %cst_51 {dimension_numbers = #tpu.dot_dimension_numbers<[1], [0], [0], [1], [0, 0, 1, 1], [], []>} : vector<256x16xf32>, vector<16x256xf32>, vector<256x256xf32> -> vector<256x256xf32>
    tpu.wait_dma2 semaphore(%arg10 : memref<!tpu.dma_semaphore, #tpu.memory_space<semaphore_mem>>) src(%arg5 : memref<256x256xf32, #tpu.memory_space<any>>) dst(%arg9 : memref<256x256xf32, #tpu.memory_space<vmem>>)
    %c0_52 = arith.constant 0 : index
    %c0_53 = arith.constant 0 : index
    %89 = vector.load %arg9[%c0_52, %c0_53] : memref<256x256xf32, #tpu.memory_space<vmem>>, vector<256x256xf32>
    %cst_54 = arith.constant 1.500000e-01 : f32
    %90 = vector.broadcast %cst_54 : f32 to vector<256x256xf32>
    %91 = arith.mulf %90, %89 : vector<256x256xf32>
    %92 = arith.addf %88, %91 : vector<256x256xf32>
    %c0_55 = arith.constant 0 : index
    %c0_56 = arith.constant 0 : index
    %93 = vector.load %arg6[%c0_55, %c0_56] : memref<256x256xf32, #tpu.memory_space<vmem>>, vector<256x256xf32>
    tpu.vector_store %arg6[%c0_55, %c0_56], %92 {strides = array<i32>} : memref<256x256xf32, #tpu.memory_space<vmem>>, vector<256x256xf32>,
    %94 = vector.shape_cast %88 : vector<256x256xf32> to vector<1x256x256xf32>
    %cst_57 = arith.constant dense<0xFF800000> : vector<1xf32>
    %95 = vector.multi_reduction <maximumf>, %94, %cst_57 [1, 2] : vector<1x256x256xf32> to vector<1xf32>
    %96 = vector.shape_cast %95 : vector<1xf32> to vector<1x1x1xf32>
    %97 = vector.extract %96[0, 0, 0] : f32 from vector<1x1x1xf32>
    %98 = vector.shape_cast %89 : vector<256x256xf32> to vector<1x256x256xf32>
    %cst_58 = arith.constant dense<0xFF800000> : vector<1xf32>
    %99 = vector.multi_reduction <maximumf>, %98, %cst_58 [1, 2] : vector<1x256x256xf32> to vector<1xf32>
    %100 = vector.shape_cast %99 : vector<1xf32> to vector<1x1x1xf32>
    %101 = vector.extract %100[0, 0, 0] : f32 from vector<1x1x1xf32>
    %102 = arith.addf %97, %101 : f32
    %c0_59 = arith.constant 0 : index
    %c0_60 = arith.constant 0 : index
    %103 = memref.load %arg7[%c0_59, %c0_60] : memref<1x1xf32, #tpu.memory_space<smem>>
    memref.store %102, %arg7[%c0_59, %c0_60] : memref<1x1xf32, #tpu.memory_space<smem>>
    return
  }
}

</mosaic_0001>

<llo_original>
// kernel: csad_forward.1
$region0: #{csad_forward.1}
  #allocation0 [shape = 'u32[]', space=smem, size = 0x4, offset = 0x4, fixed_abs, tag = 'smem constant byte address 0x4 - core index']
  #allocation1 [shape = 'u32[144,128]{1,0:T(1,128)}', space=vmem, size = 0x12000, scoped, tag = 'internal scratch']
  #allocation2 [shape = 'f32[16,16]{1,0:T(8,128)}', space=vmem, size = 0x2000, scoped, tag = 'scratch operand']
  #allocation3 [shape = 'f32[256,256]{1,0:T(8,128)}', space=vmem, size = 0x40000, scoped, tag = 'scratch operand']
  #allocation4 [shape = 's32[1]{0}', space=sflag, size = 0x4, scoped, tag = 'scratch operand']
  #allocation11 [shape = 's32[]', space=sflag, size = 0x4, offset = 0, fixed_abs, tag = 'sflag constant byte address 0x0 - dummy sync flag']
  #allocation12 [shape = 's32[]', space=sflag, size = 0x4, offset = 0, fixed_abs, tag = 'sflag constant byte address 0x0 - dummy sync flag']
  #allocation13 [shape = 'u32[]', space=smem, size = 0x4, offset = 0x44, fixed_abs, tag = 'smem constant byte address 0x44 - assertion arg 0']
  #allocation14 [shape = 'u32[]', space=smem, size = 0x4, offset = 0x48, fixed_abs, tag = 'smem constant byte address 0x48 - assertion arg 1']
  %s0 = inlined_call_operand.vmem [shape: f32[4], index: 0, kind: input, shape index: {}]
  %s1 = inlined_call_operand.vmem [shape: f32[128,256], index: 1, kind: input, shape index: {}]
  %s2 = inlined_call_operand.vmem [shape: f32[32,2], index: 2, kind: input, shape index: {}]
  %s3 = inlined_call_operand.vmem [shape: f32[256,16], index: 3, kind: input, shape index: {}]
  %s4 = inlined_call_operand.vmem [shape: f32[16,256], index: 4, kind: input, shape index: {}]
  %s5 = inlined_call_operand.hbm [shape: f32[256,256], index: 5, kind: input, shape index: {}]
  %s6 = inlined_call_operand.hbm [shape: f32[256,256], index: 6, kind: output, shape index: {0}]
  %s7 = inlined_call_operand.hbm [shape: f32[1,1], index: 7, kind: output, shape index: {1}]
  %8 = xla_tuple %s6, %s7
  %s9 = sld [smem:[#allocation0]]
  $region46: #{csad_forward.1} parent=0
    _
  %s11 = ssub.s32 1, %s9
  %s12 = scalar_select 0, %s11, %s9
  $region1: #{csad_forward.1} parent=0
    #allocation5 [shape = 'u8[512]{0}', space=smem, size = 0x200, scoped, tag = 'input window, operand 0, single buffered']
    #allocation6 [shape = 's32[1]{0}', space=sflag, size = 0x4, scoped, tag = 'scoped memory for csad_forward.1']
    #allocation7 [shape = 's32[1]{0}', space=sflag, size = 0x4, scoped, tag = 'scoped memory for csad_forward.1']
    #allocation8 [shape = 's32[1]{0}', space=sflag, size = 0x4, scoped, tag = 'scoped memory for csad_forward.1']
    #allocation9 [shape = 'u8[262144]{0}', space=vmem, size = 0x40000, scoped, tag = 'output window, operand 0, single buffered']
    #allocation10 [shape = 'u8[512]{0}', space=smem, size = 0x200, scoped, tag = 'output window, operand 1, single buffered']
    %13 = vsyncpa [#allocation8], 0
    %14 = vsyncpa [#allocation6], 0
    %15 = vsyncpa [#allocation7], 0
    // Predicated region
    $region2: #{csad_forward.1} parent=1 // pred_check
      _
    $region3: #{csad_forward.1} parent=1 // pred_check_branch
      %17 = sbr.rel (0) target = $region5
    $region4: #{csad_forward.1} parent=1 // pred_region
      %s19 = ssub.s32 16, 16
      %20 = vsyncadd [#allocation8], %s19
      %s22 = sshll.u32 %s0, 4
      %s23 = int_to_ptr.vmem [resolvable:$true] %s22
      %25 = dma.vmem_to_smem %s23, 16, [#allocation5], [#allocation8]
    $region5: #{csad_forward.1} parent=1 // pred_fallthru
      _
    // Predicated region
    $region6: #{csad_forward.1} parent=1 // pred_check
      _
    $region7: #{csad_forward.1} parent=1 // pred_check_branch
      %27 = sbr.rel (0) target = $region9
    $region8: #{csad_forward.1} parent=1 // pred_region
      _
    $region9: #{csad_forward.1} parent=1 // pred_fallthru
      _
    // Predicated region
    $region10: #{csad_forward.1} parent=1 // pred_check
      _
    $region11: #{csad_forward.1} parent=1 // pred_check_branch
      %29 = sbr.rel (0) target = $region13
    $region12: #{csad_forward.1} parent=1 // pred_region
      _
    $region13: #{csad_forward.1} parent=1 // pred_fallthru
      _
    // Predicated region
    $region14: #{csad_forward.1} parent=1 // pred_check
      _
    $region15: #{csad_forward.1} parent=1 // pred_check_branch
      %31 = sbr.rel (0) target = $region17
    $region16: #{csad_forward.1} parent=1 // pred_region
      _
    $region17: #{csad_forward.1} parent=1 // pred_fallthru
      _
    // Predicated region
    $region18: #{csad_forward.1} parent=1 // pred_check
      _
    $region19: #{csad_forward.1} parent=1 // pred_check_branch
      %33 = sbr.rel (0) target = $region21
    $region20: #{csad_forward.1} parent=1 // pred_region
      _
    $region21: #{csad_forward.1} parent=1 // pred_fallthru
      _
    // Predicated region
    $region22: #{csad_forward.1} parent=1 // pred_check
      _
    $region23: #{csad_forward.1} parent=1 // pred_check_branch
      %35 = sbr.rel (0) target = $region25
    $region24: #{csad_forward.1} parent=1 // pred_region
      %36 = dma.done [#allocation8], 16
    $region25: #{csad_forward.1} parent=1 // pred_fallthru
      _
    %37 = sfence
    // Predicated region
    $region26: #{csad_forward.1} parent=1 // pred_check
      _
    $region27: #{csad_forward.1} parent=1 // pred_check_branch
      %39 = sbr.rel target = $region29
    $region28: #{csad_forward.1} parent=1 // pred_region
      %40 = sst [smem:[#allocation13]] [#allocation12]
      %41 = sst [smem:[#allocation14]] [#allocation11]
    $region29: #{csad_forward.1} parent=1 // pred_fallthru
      _
    %43 = shalt.err (0)
    %s45 = sshll.u32 [#allocation3], 4
    %s46 = int_to_ptr.vmem [resolvable:$true] %s45
    %48 = dma.hbm_to_vmem [thread:$0]  %s5, 8192, %s46, [#allocation4]
    %s49 = sld [smem:[#allocation5]]
    %s50 = sld [smem:[#allocation5 + $0x1]]
    %s51 = sld [smem:[#allocation5 + $0x2]]
    %s52 = sld [smem:[#allocation5 + $0x3]]
    %s53 = ssub.f32 %s50, %s49
    %s54 = ssub.f32 %s52, %s51
    %p55 = scmp.gt.f32.partialorder %s53, 1e-06
    %v56 = vstv %s53
    %v57 = vrcp.pop %v56
    %s58 = vtos %v57
    %s59 = smul.f32 0.1, %s58
    %s60 = scalar_select %p55, %s59, 1.0
    %s61 = smul.f32 %s49, -0.1
    %v62 = vstv %s53
    %v63 = vrcp.pop %v62
    %s64 = vtos %v63
    %s65 = smul.f32 %s61, %s64
    %s66 = scalar_select %p55, %s65, 0.0
    %p67 = scmp.gt.f32.partialorder %s54, 1e-06
    %v68 = vstv %s54
    %v69 = vrcp.pop %v68
    %s70 = vtos %v69
    %s71 = smul.f32 0.1, %s70
    %s72 = scalar_select %p67, %s71, 1.0
    %s73 = smul.f32 %s51, -0.1
    %v74 = vstv %s54
    %v75 = vrcp.pop %v74
    %s76 = vtos %v75
    %s77 = smul.f32 %s73, %s76
    %s78 = scalar_select %p67, %s77, 0.0
    %v79 = vld [vmem:[%s2] sm:$0xff]
    %v80 = vld [vmem:[%s2 + $0x8] sm:$0xff]
    %v81 = vld [vmem:[%s2 + $0x10] sm:$0xff]
    %v82 = vld [vmem:[%s2 + $0x18] sm:$0xff]
    %v83 = vrcp.pop %v79
    %v84 = vrcp.pop %v80
    %v85 = vrcp.pop %v81
    %v86 = vrcp.pop %v82
    %v87 = vld [vmem:[%s1] sm:$0xff]
    %v88 = vld [vmem:[%s1 + $0x8] sm:$0xff]
    %v89 = vld [vmem:[%s1 + $0x10] sm:$0xff]
    %v90 = vld [vmem:[%s1 + $0x18] sm:$0xff]
    %v91 = vld [vmem:[%s1 + $0x20] sm:$0xff]
    %v92 = vld [vmem:[%s1 + $0x28] sm:$0xff]
    %v93 = vld [vmem:[%s1 + $0x30] sm:$0xff]
    %v94 = vld [vmem:[%s1 + $0x38] sm:$0xff]
    %96 = vset.pattern.permute.xlu0 0
    %97 = vperm.xlu0 %96, %v79
    %v98 = vpop.permute.xlu0 %97
    %101 = vset.pattern.permute.xlu0 0
    %102 = vperm.xlu0 %101, %v80
    %v103 = vpop.permute.xlu0 %102
    %106 = vset.pattern.permute.xlu0 0
    %107 = vperm.xlu0 %106, %v81
    %v108 = vpop.permute.xlu0 %107
    %111 = vset.pattern.permute.xlu0 0
    %112 = vperm.xlu0 %111, %v82
    %v113 = vpop.permute.xlu0 %112
    %v115 = vsub.f32 %v87, %v98
    %v116 = vsub.f32 %v88, %v98
    %v117 = vsub.f32 %v89, %v103
    %v118 = vsub.f32 %v90, %v103
    %v119 = vsub.f32 %v91, %v108
    %v120 = vsub.f32 %v92, %v108
    %v121 = vsub.f32 %v93, %v113
    %v122 = vsub.f32 %v94, %v113
    %124 = vset.pattern.permute.xlu0 1
    %125 = vperm.xlu0 %124, %v83
    %v126 = vpop.permute.xlu0 %125
    %129 = vset.pattern.permute.xlu0 1
    %130 = vperm.xlu0 %129, %v84
    %v131 = vpop.permute.xlu0 %130
    %134 = vset.pattern.permute.xlu0 1
    %135 = vperm.xlu0 %134, %v85
    %v136 = vpop.permute.xlu0 %135
    %139 = vset.pattern.permute.xlu0 1
    %140 = vperm.xlu0 %139, %v86
    %v141 = vpop.permute.xlu0 %140
    %v143 = vmul.f32 %v115, %v126
    %v144 = vmul.f32 %v116, %v126
    %v145 = vmul.f32 %v117, %v131
    %v146 = vmul.f32 %v118, %v131
    %v147 = vmul.f32 %v119, %v136
    %v148 = vmul.f32 %v120, %v136
    %v149 = vmul.f32 %v121, %v141
    %v150 = vmul.f32 %v122, %v141
    %v151 = vld [vmem:[%s1 + $0x40] sm:$0xff]
    %v152 = vld [vmem:[%s1 + $0x48] sm:$0xff]
    %v153 = vld [vmem:[%s1 + $0x50] sm:$0xff]
    %v154 = vld [vmem:[%s1 + $0x58] sm:$0xff]
    %v155 = vld [vmem:[%s1 + $0x60] sm:$0xff]
    %v156 = vld [vmem:[%s1 + $0x68] sm:$0xff]
    %v157 = vld [vmem:[%s1 + $0x70] sm:$0xff]
    %v158 = vld [vmem:[%s1 + $0x78] sm:$0xff]
    %v159 = vsub.f32 %v143, %v151
    %v160 = vsub.f32 %v144, %v152
    %v161 = vsub.f32 %v145, %v153
    %v162 = vsub.f32 %v146, %v154
    %v163 = vsub.f32 %v147, %v155
    %v164 = vsub.f32 %v148, %v156
    %v165 = vsub.f32 %v149, %v157
    %v166 = vsub.f32 %v150, %v158
    %v167 = vld [vmem:[%s1 + $0xc0] sm:$0xff]
    %v168 = vld [vmem:[%s1 + $0xc8] sm:$0xff]
    %v169 = vld [vmem:[%s1 + $0xd0] sm:$0xff]
    %v170 = vld [vmem:[%s1 + $0xd8] sm:$0xff]
    %v171 = vld [vmem:[%s1 + $0xe0] sm:$0xff]
    %v172 = vld [vmem:[%s1 + $0xe8] sm:$0xff]
    %v173 = vld [vmem:[%s1 + $0xf0] sm:$0xff]
    %v174 = vld [vmem:[%s1 + $0xf8] sm:$0xff]
    %v175 = vld [vmem:[%s1 + $0x80] sm:$0xff]
    %v176 = vld [vmem:[%s1 + $0x88] sm:$0xff]
    %v177 = vld [vmem:[%s1 + $0x90] sm:$0xff]
    %v178 = vld [vmem:[%s1 + $0x98] sm:$0xff]
    %v179 = vld [vmem:[%s1 + $0xa0] sm:$0xff]
    %v180 = vld [vmem:[%s1 + $0xa8] sm:$0xff]
    %v181 = vld [vmem:[%s1 + $0xb0] sm:$0xff]
    %v182 = vld [vmem:[%s1 + $0xb8] sm:$0xff]
    %v183 = vsub.f32 %v167, %v175
    %v184 = vsub.f32 %v168, %v176
    %v185 = vsub.f32 %v169, %v177
    %v186 = vsub.f32 %v170, %v178
    %v187 = vsub.f32 %v171, %v179
    %v188 = vsub.f32 %v172, %v180
    %v189 = vsub.f32 %v173, %v181
    %v190 = vsub.f32 %v174, %v182
    %v191 = vmul.f32 %v159, %v159
    %v192 = vmul.f32 %v160, %v160
    %v193 = vmul.f32 %v161, %v161
    %v194 = vmul.f32 %v162, %v162
    %v195 = vmul.f32 %v163, %v163
    %v196 = vmul.f32 %v164, %v164
    %v197 = vmul.f32 %v165, %v165
    %v198 = vmul.f32 %v166, %v166
    %v199 = vadd.f32 %v191, %v193
    %v200 = vadd.f32 %v199, %v195
    %v201 = vadd.f32 %v200, %v197
    %v202 = vrot.slane %v201, 4
    %v203 = vadd.f32 %v201, %v202
    %v204 = vrot.slane %v203, 2
    %v205 = vadd.f32 %v203, %v204
    %v206 = vrot.slane %v205, 1
    %v207 = vadd.f32 %v205, %v206
    %v208 = vadd.f32 %v192, %v194
    %v209 = vadd.f32 %v208, %v196
    %v210 = vadd.f32 %v209, %v198
    %v211 = vrot.slane %v210, 4
    %v212 = vadd.f32 %v210, %v211
    %v213 = vrot.slane %v212, 2
    %v214 = vadd.f32 %v212, %v213
    %v215 = vrot.slane %v214, 1
    %v216 = vadd.f32 %v214, %v215
    %v217 = vrcp.pop 32.0
    %v218 = vmul.f32 %v207, %v217
    %v219 = vmul.f32 %v216, %v217
    %v220 = vmul.f32 %v183, %v183
    %v221 = vmul.f32 %v184, %v184
    %v222 = vmul.f32 %v185, %v185
    %v223 = vmul.f32 %v186, %v186
    %v224 = vmul.f32 %v187, %v187
    %v225 = vmul.f32 %v188, %v188
    %v226 = vmul.f32 %v189, %v189
    %v227 = vmul.f32 %v190, %v190
    %v228 = vadd.f32 %v220, %v222
    %v229 = vadd.f32 %v228, %v224
    %v230 = vadd.f32 %v229, %v226
    %v231 = vrot.slane %v230, 4
    %v232 = vadd.f32 %v230, %v231
    %v233 = vrot.slane %v232, 2
    %v234 = vadd.f32 %v232, %v233
    %v235 = vrot.slane %v234, 1
    %v236 = vadd.f32 %v234, %v235
    %v237 = vadd.f32 %v221, %v223
    %v238 = vadd.f32 %v237, %v225
    %v239 = vadd.f32 %v238, %v227
    %v240 = vrot.slane %v239, 4
    %v241 = vadd.f32 %v239, %v240
    %v242 = vrot.slane %v241, 2
    %v243 = vadd.f32 %v241, %v242
    %v244 = vrot.slane %v243, 1
    %v245 = vadd.f32 %v243, %v244
    %v246 = vmul.f32 %v236, %v217
    %v247 = vmul.f32 %v245, %v217
    %v248 = vstv %s60
    %v249 = vmul.f32 %v248, %v218
    %v250 = vmul.f32 %v248, %v219
    %v251 = vstv %s66
    %v252 = vadd.f32 %v249, %v251
    %v253 = vadd.f32 %v250, %v251
    %v254 = vstv %s72
    %v255 = vmul.f32 %v254, %v246
    %v256 = vmul.f32 %v254, %v247
    %v257 = vstv %s78
    %v258 = vadd.f32 %v255, %v257
    %v259 = vadd.f32 %v256, %v257
    %v260 = vadd.f32 %v252, %v258
    %v261 = vadd.f32 %v253, %v259
    %vm262 = vcmask 122880
    %263 = vst.msk [vmem:[#allocation2] sm:$0x1] %vm262, %v260
    %265 = vrot.lane.b32.xlu0 %v260, 112
    %v266 = vpop.permute.xlu0 %265
    %268 = vst.msk [vmem:[#allocation2 + $0x1] sm:$0x1] %vm262, %v266
    %269 = vrot.lane.b32.xlu0 %v260, 96
    %v270 = vpop.permute.xlu0 %269
    %272 = vst.msk [vmem:[#allocation2 + $0x2] sm:$0x1] %vm262, %v270
    %273 = vrot.lane.b32.xlu0 %v260, 80
    %v274 = vpop.permute.xlu0 %273
    %276 = vst.msk [vmem:[#allocation2 + $0x3] sm:$0x1] %vm262, %v274
    %277 = vrot.lane.b32.xlu0 %v260, 64
    %v278 = vpop.permute.xlu0 %277
    %280 = vst.msk [vmem:[#allocation2 + $0x4] sm:$0x1] %vm262, %v278
    %281 = vrot.lane.b32.xlu0 %v260, 48
    %v282 = vpop.permute.xlu0 %281
    %284 = vst.msk [vmem:[#allocation2 + $0x5] sm:$0x1] %vm262, %v282
    %285 = vrot.lane.b32.xlu0 %v260, 32
    %v286 = vpop.permute.xlu0 %285
    %288 = vst.msk [vmem:[#allocation2 + $0x6] sm:$0x1] %vm262, %v286
    %289 = vrot.lane.b32.xlu0 %v260, 16
    %v290 = vpop.permute.xlu0 %289
    %292 = vst.msk [vmem:[#allocation2 + $0x7] sm:$0x1] %vm262, %v290
    %293 = vst.msk [vmem:[#allocation2 + $0x8] sm:$0x1] %vm262, %v261
    %295 = vrot.lane.b32.xlu0 %v261, 112
    %v296 = vpop.permute.xlu0 %295
    %298 = vst.msk [vmem:[#allocation2 + $0x9] sm:$0x1] %vm262, %v296
    %299 = vrot.lane.b32.xlu0 %v261, 96
    %v300 = vpop.permute.xlu0 %299
    %302 = vst.msk [vmem:[#allocation2 + $0xa] sm:$0x1] %vm262, %v300
    %303 = vrot.lane.b32.xlu0 %v261, 80
    %v304 = vpop.permute.xlu0 %303
    %306 = vst.msk [vmem:[#allocation2 + $0xb] sm:$0x1] %vm262, %v304
    %307 = vrot.lane.b32.xlu0 %v261, 64
    %v308 = vpop.permute.xlu0 %307
    %310 = vst.msk [vmem:[#allocation2 + $0xc] sm:$0x1] %vm262, %v308
    %311 = vrot.lane.b32.xlu0 %v261, 48
    %v312 = vpop.permute.xlu0 %311
    %314 = vst.msk [vmem:[#allocation2 + $0xd] sm:$0x1] %vm262, %v312
    %315 = vrot.lane.b32.xlu0 %v261, 32
    %v316 = vpop.permute.xlu0 %315
    %318 = vst.msk [vmem:[#allocation2 + $0xe] sm:$0x1] %vm262, %v316
    %319 = vrot.lane.b32.xlu0 %v261, 16
    %v320 = vpop.permute.xlu0 %319
    %322 = vst.msk [vmem:[#allocation2 + $0xf] sm:$0x1] %vm262, %v320
    %v323 = vld [vmem:[#allocation2] sm:$0xff]
    %v324 = vld [vmem:[#allocation2 + $0x8] sm:$0xff]
    %v325 = vld [vmem:[%s3] sm:$0xff]
    %v326 = vld [vmem:[%s3 + $0x8] sm:$0xff]
    %v327 = vld [vmem:[%s3 + $0x10] sm:$0xff]
    %v328 = vld [vmem:[%s3 + $0x18] sm:$0xff]
    %v329 = vld [vmem:[%s3 + $0x20] sm:$0xff]
    %v330 = vld [vmem:[%s3 + $0x28] sm:$0xff]
    %v331 = vld [vmem:[%s3 + $0x30] sm:$0xff]
    %v332 = vld [vmem:[%s3 + $0x38] sm:$0xff]
    %v333 = vld [vmem:[%s3 + $0x40] sm:$0xff]
    %v334 = vld [vmem:[%s3 + $0x48] sm:$0xff]
    %v335 = vld [vmem:[%s3 + $0x50] sm:$0xff]
    %v336 = vld [vmem:[%s3 + $0x58] sm:$0xff]
    %v337 = vld [vmem:[%s3 + $0x60] sm:$0xff]
    %v338 = vld [vmem:[%s3 + $0x68] sm:$0xff]
    %v339 = vld [vmem:[%s3 + $0x70] sm:$0xff]
    %v340 = vld [vmem:[%s3 + $0x78] sm:$0xff]
    %v341 = vld [vmem:[%s3 + $0x80] sm:$0xff]
    %v342 = vld [vmem:[%s3 + $0x88] sm:$0xff]
    %v343 = vld [vmem:[%s3 + $0x90] sm:$0xff]
    %v344 = vld [vmem:[%s3 + $0x98] sm:$0xff]
    %v345 = vld [vmem:[%s3 + $0xa0] sm:$0xff]
    %v346 = vld [vmem:[%s3 + $0xa8] sm:$0xff]
    %v347 = vld [vmem:[%s3 + $0xb0] sm:$0xff]
    %v348 = vld [vmem:[%s3 + $0xb8] sm:$0xff]
    %v349 = vld [vmem:[%s3 + $0xc0] sm:$0xff]
    %v350 = vld [vmem:[%s3 + $0xc8] sm:$0xff]
    %v351 = vld [vmem:[%s3 + $0xd0] sm:$0xff]
    %v352 = vld [vmem:[%s3 + $0xd8] sm:$0xff]
    %v353 = vld [vmem:[%s3 + $0xe0] sm:$0xff]
    %v354 = vld [vmem:[%s3 + $0xe8] sm:$0xff]
    %v355 = vld [vmem:[%s3 + $0xf0] sm:$0xff]
    %v356 = vld [vmem:[%s3 + $0xf8] sm:$0xff]
    %vm357 = vcmask 130048
    %v359 = vsel %vm357, %v325, 0
    %v362 = vsel %vm357, %v326, 0
    %v365 = vsel %vm357, %v327, 0
    %v368 = vsel %vm357, %v328, 0
    %v371 = vsel %vm357, %v329, 0
    %v374 = vsel %vm357, %v330, 0
    %v377 = vsel %vm357, %v331, 0
    %v380 = vsel %vm357, %v332, 0
    %v383 = vsel %vm357, %v333, 0
    %v386 = vsel %vm357, %v334, 0
    %v389 = vsel %vm357, %v335, 0
    %v392 = vsel %vm357, %v336, 0
    %v395 = vsel %vm357, %v337, 0
    %v398 = vsel %vm357, %v338, 0
    %v401 = vsel %vm357, %v339, 0
    %v404 = vsel %vm357, %v340, 0
    %v407 = vsel %vm357, %v341, 0
    %v410 = vsel %vm357, %v342, 0
    %v413 = vsel %vm357, %v343, 0
    %v416 = vsel %vm357, %v344, 0
    %v419 = vsel %vm357, %v345, 0
    %v422 = vsel %vm357, %v346, 0
    %v425 = vsel %vm357, %v347, 0
    %v428 = vsel %vm357, %v348, 0
    %v431 = vsel %vm357, %v349, 0
    %v434 = vsel %vm357, %v350, 0
    %v437 = vsel %vm357, %v351, 0
    %v440 = vsel %vm357, %v352, 0
    %v443 = vsel %vm357, %v353, 0
    %v446 = vsel %vm357, %v354, 0
    %v449 = vsel %vm357, %v355, 0
    %v452 = vsel %vm357, %v356, 0
    %454 = vmatprep.subr.mxu0 0.0
    %455 = vmatpush1.msra.mxu0 %v323
    %456 = vmatprep.subr.mxu0 0.0
    %457 = vmatpush1.msra.mxu0 %v324
    %458 = vmatprep.subr.mxu0 0.0
    %459 = vmatpush1.msra.mxu0 0.0
    %460 = vmatprep.subr.mxu0 0.0
    %461 = vmatpush1.msra.mxu0 0.0
    %462 = vmatprep.subr.mxu0 0.0
    %463 = vmatpush1.msra.mxu0 0.0
    %464 = vmatprep.subr.mxu0 0.0
    %465 = vmatpush1.msra.mxu0 0.0
    %466 = vmatprep.subr.mxu0 0.0
    %467 = vmatpush1.msra.mxu0 0.0
    %468 = vmatprep.subr.mxu0 0.0
    %469 = vmatpush1.msra.mxu0 0.0
    %470 = vmatprep.subr.mxu0 0.0
    %471 = vmatpush1.msra.mxu0 0.0
    %472 = vmatprep.subr.mxu0 0.0
    %473 = vmatpush1.msra.mxu0 0.0
    %474 = vmatprep.subr.mxu0 0.0
    %475 = vmatpush1.msra.mxu0 0.0
    %476 = vmatprep.subr.mxu0 0.0
    %477 = vmatpush1.msra.mxu0 0.0
    %478 = vmatprep.subr.mxu0 0.0
    %479 = vmatpush1.msra.mxu0 0.0
    %480 = vmatprep.subr.mxu0 0.0
    %481 = vmatpush1.msra.mxu0 0.0
    %482 = vmatprep.subr.mxu0 0.0
    %483 = vmatpush1.msra.mxu0 0.0
    %484 = vmatprep.subr.mxu0 0.0
    %485 = vmatpush1.msra.mxu0 0.0
    %486 = vmatprep.subr.mxu0 0.0
    %487 = vmatpush1.msra.mxu0 0.0
    %488 = vmatprep.subr.mxu0 0.0
    %489 = vmatpush1.msra.mxu0 0.0
    %490 = vmatprep.subr.mxu0 0.0
    %491 = vmatpush1.msra.mxu0 0.0
    %492 = vmatprep.subr.mxu0 0.0
    %493 = vmatpush1.msra.mxu0 0.0
    %494 = vmatprep.subr.mxu0 0.0
    %495 = vmatpush1.msra.mxu0 0.0
    %496 = vmatprep.subr.mxu0 0.0
    %497 = vmatpush1.msra.mxu0 0.0
    %498 = vmatprep.subr.mxu0 0.0
    %499 = vmatpush1.msra.mxu0 0.0
    %500 = vmatprep.subr.mxu0 0.0
    %501 = vmatpush1.msra.mxu0 0.0
    %502 = vmatprep.subr.mxu0 0.0
    %503 = vmatpush1.msra.mxu0 0.0
    %504 = vmatprep.subr.mxu0 0.0
    %505 = vmatpush1.msra.mxu0 0.0
    %506 = vmatprep.subr.mxu0 0.0
    %507 = vmatpush1.msra.mxu0 0.0
    %508 = vmatprep.subr.mxu0 0.0
    %509 = vmatpush1.msra.mxu0 0.0
    %510 = vmatprep.subr.mxu0 0.0
    %511 = vmatpush1.msra.mxu0 0.0
    %512 = vmatprep.subr.mxu0 0.0
    %513 = vmatpush1.msra.mxu0 0.0
    %514 = vmatprep.subr.mxu0 0.0
    %515 = vmatpush1.msra.mxu0 0.0
    %516 = vmatprep.subr.mxu0 0.0
    %517 = vmatpush1.msra.mxu0 0.0
    %518 = vmatprep.mubr.f32.mxu0 0.0
    %519 = vmatmul.mubr.f32.gmra.mrb[0].mxu0 %v359
    %v520 = vpop.f32.mrb[0].mxu0
    %v521 = vadd.f32 0.0, %v520
    %v522 = vpop.f32.mrb[0].mxu0
    %523 = vmatprep.mubr.f32.mxu0 0.0
    %524 = vmatmul.mubr.f32.gmra.mrb[0].mxu0 %v362
    %v525 = vpop.f32.mrb[0].mxu0
    %v526 = vadd.f32 0.0, %v525
    %v527 = vpop.f32.mrb[0].mxu0
    %528 = vmatprep.mubr.f32.mxu0 0.0
    %529 = vmatmul.mubr.f32.gmra.mrb[0].mxu0 %v365
    %v530 = vpop.f32.mrb[0].mxu0
    %v531 = vadd.f32 0.0, %v530
    %v532 = vpop.f32.mrb[0].mxu0
    %533 = vmatprep.mubr.f32.mxu0 0.0
    %534 = vmatmul.mubr.f32.gmra.mrb[0].mxu0 %v368
    %v535 = vpop.f32.mrb[0].mxu0
    %v536 = vadd.f32 0.0, %v535
    %v537 = vpop.f32.mrb[0].mxu0
    %538 = vmatprep.mubr.f32.mxu0 0.0
    %539 = vmatmul.mubr.f32.gmra.mrb[0].mxu0 %v371
    %v540 = vpop.f32.mrb[0].mxu0
    %v541 = vadd.f32 0.0, %v540
    %v542 = vpop.f32.mrb[0].mxu0
    %543 = vmatprep.mubr.f32.mxu0 0.0
    %544 = vmatmul.mubr.f32.gmra.mrb[0].mxu0 %v374
    %v545 = vpop.f32.mrb[0].mxu0
    %v546 = vadd.f32 0.0, %v545
    %v547 = vpop.f32.mrb[0].mxu0
    %548 = vmatprep.mubr.f32.mxu0 0.0
    %549 = vmatmul.mubr.f32.gmra.mrb[0].mxu0 %v377
    %v550 = vpop.f32.mrb[0].mxu0
    %v551 = vadd.f32 0.0, %v550
    %v552 = vpop.f32.mrb[0].mxu0
    %553 = vmatprep.mubr.f32.mxu0 0.0
    %554 = vmatmul.mubr.f32.gmra.mrb[0].mxu0 %v380
    %v555 = vpop.f32.mrb[0].mxu0
    %v556 = vadd.f32 0.0, %v555
    %v557 = vpop.f32.mrb[0].mxu0
    %558 = vmatprep.mubr.f32.mxu0 0.0
    %559 = vmatmul.mubr.f32.gmra.mrb[0].mxu0 %v383
    %v560 = vpop.f32.mrb[0].mxu0
    %v561 = vadd.f32 0.0, %v560
    %v562 = vpop.f32.mrb[0].mxu0
    %563 = vmatprep.mubr.f32.mxu0 0.0
    %564 = vmatmul.mubr.f32.gmra.mrb[0].mxu0 %v386
    %v565 = vpop.f32.mrb[0].mxu0
    %v566 = vadd.f32 0.0, %v565
    %v567 = vpop.f32.mrb[0].mxu0
    %568 = vmatprep.mubr.f32.mxu0 0.0
    %569 = vmatmul.mubr.f32.gmra.mrb[0].mxu0 %v389
    %v570 = vpop.f32.mrb[0].mxu0
    %v571 = vadd.f32 0.0, %v570
    %v572 = vpop.f32.mrb[0].mxu0
    %573 = vmatprep.mubr.f32.mxu0 0.0
    %574 = vmatmul.mubr.f32.gmra.mrb[0].mxu0 %v392
    %v575 = vpop.f32.mrb[0].mxu0
    %v576 = vadd.f32 0.0, %v575
    %v577 = vpop.f32.mrb[0].mxu0
    %578 = vmatprep.mubr.f32.mxu0 0.0
    %579 = vmatmul.mubr.f32.gmra.mrb[0].mxu0 %v395
    %v580 = vpop.f32.mrb[0].mxu0
    %v581 = vadd.f32 0.0, %v580
    %v582 = vpop.f32.mrb[0].mxu0
    %583 = vmatprep.mubr.f32.mxu0 0.0
    %584 = vmatmul.mubr.f32.gmra.mrb[0].mxu0 %v398
    %v585 = vpop.f32.mrb[0].mxu0
    %v586 = vadd.f32 0.0, %v585
    %v587 = vpop.f32.mrb[0].mxu0
    %588 = vmatprep.mubr.f32.mxu0 0.0
    %589 = vmatmul.mubr.f32.gmra.mrb[0].mxu0 %v401
    %v590 = vpop.f32.mrb[0].mxu0
    %v591 = vadd.f32 0.0, %v590
    %v592 = vpop.f32.mrb[0].mxu0
    %593 = vmatprep.mubr.f32.mxu0 0.0
    %594 = vmatmul.mubr.f32.gmra.mrb[0].mxu0 %v404
    %v595 = vpop.f32.mrb[0].mxu0
    %v596 = vadd.f32 0.0, %v595
    %v597 = vpop.f32.mrb[0].mxu0
    %598 = vmatprep.mubr.f32.mxu0 0.0
    %599 = vmatmul.mubr.f32.gmra.mrb[0].mxu0 %v407
    %v600 = vpop.f32.mrb[0].mxu0
    %v601 = vadd.f32 0.0, %v600
    %v602 = vpop.f32.mrb[0].mxu0
    %603 = vmatprep.mubr.f32.mxu0 0.0
    %604 = vmatmul.mubr.f32.gmra.mrb[0].mxu0 %v410
    %v605 = vpop.f32.mrb[0].mxu0
    %v606 = vadd.f32 0.0, %v605
    %v607 = vpop.f32.mrb[0].mxu0
    %608 = vmatprep.mubr.f32.mxu0 0.0
    %609 = vmatmul.mubr.f32.gmra.mrb[0].mxu0 %v413
    %v610 = vpop.f32.mrb[0].mxu0
    %v611 = vadd.f32 0.0, %v610
    %v612 = vpop.f32.mrb[0].mxu0
    %613 = vmatprep.mubr.f32.mxu0 0.0
    %614 = vmatmul.mubr.f32.gmra.mrb[0].mxu0 %v416
    %v615 = vpop.f32.mrb[0].mxu0
    %v616 = vadd.f32 0.0, %v615
    %v617 = vpop.f32.mrb[0].mxu0
    %618 = vmatprep.mubr.f32.mxu0 0.0
    %619 = vmatmul.mubr.f32.gmra.mrb[0].mxu0 %v419
    %v620 = vpop.f32.mrb[0].mxu0
    %v621 = vadd.f32 0.0, %v620
    %v622 = vpop.f32.mrb[0].mxu0
    %623 = vmatprep.mubr.f32.mxu0 0.0
    %624 = vmatmul.mubr.f32.gmra.mrb[0].mxu0 %v422
    %v625 = vpop.f32.mrb[0].mxu0
    %v626 = vadd.f32 0.0, %v625
    %v627 = vpop.f32.mrb[0].mxu0
    %628 = vmatprep.mubr.f32.mxu0 0.0
    %629 = vmatmul.mubr.f32.gmra.mrb[0].mxu0 %v425
    %v630 = vpop.f32.mrb[0].mxu0
    %v631 = vadd.f32 0.0, %v630
    %v632 = vpop.f32.mrb[0].mxu0
    %633 = vmatprep.mubr.f32.mxu0 0.0
    %634 = vmatmul.mubr.f32.gmra.mrb[0].mxu0 %v428
    %v635 = vpop.f32.mrb[0].mxu0
    %v636 = vadd.f32 0.0, %v635
    %v637 = vpop.f32.mrb[0].mxu0
    %638 = vmatprep.mubr.f32.mxu0 0.0
    %639 = vmatmul.mubr.f32.gmra.mrb[0].mxu0 %v431
    %v640 = vpop.f32.mrb[0].mxu0
    %v641 = vadd.f32 0.0, %v640
    %v642 = vpop.f32.mrb[0].mxu0
    %643 = vmatprep.mubr.f32.mxu0 0.0
    %644 = vmatmul.mubr.f32.gmra.mrb[0].mxu0 %v434
    %v645 = vpop.f32.mrb[0].mxu0
    %v646 = vadd.f32 0.0, %v645
    %v647 = vpop.f32.mrb[0].mxu0
    %648 = vmatprep.mubr.f32.mxu0 0.0
    %649 = vmatmul.mubr.f32.gmra.mrb[0].mxu0 %v437
    %v650 = vpop.f32.mrb[0].mxu0
    %v651 = vadd.f32 0.0, %v650
    %v652 = vpop.f32.mrb[0].mxu0
    %653 = vmatprep.mubr.f32.mxu0 0.0
    %654 = vmatmul.mubr.f32.gmra.mrb[0].mxu0 %v440
    %v655 = vpop.f32.mrb[0].mxu0
    %v656 = vadd.f32 0.0, %v655
    %v657 = vpop.f32.mrb[0].mxu0
    %658 = vmatprep.mubr.f32.mxu0 0.0
    %659 = vmatmul.mubr.f32.gmra.mrb[0].mxu0 %v443
    %v660 = vpop.f32.mrb[0].mxu0
    %v661 = vadd.f32 0.0, %v660
    %v662 = vpop.f32.mrb[0].mxu0
    %663 = vmatprep.mubr.f32.mxu0 0.0
    %664 = vmatmul.mubr.f32.gmra.mrb[0].mxu0 %v446
    %v665 = vpop.f32.mrb[0].mxu0
    %v666 = vadd.f32 0.0, %v665
    %v667 = vpop.f32.mrb[0].mxu0
    %668 = vmatprep.mubr.f32.mxu0 0.0
    %669 = vmatmul.mubr.f32.gmra.mrb[0].mxu0 %v449
    %v670 = vpop.f32.mrb[0].mxu0
    %v671 = vadd.f32 0.0, %v670
    %v672 = vpop.f32.mrb[0].mxu0
    %673 = vmatprep.mubr.f32.mxu0 0.0
    %674 = vmatmul.mubr.f32.gmra.mrb[0].mxu0 %v452
    %v675 = vpop.f32.mrb[0].mxu0
    %v676 = vadd.f32 0.0, %v675
    %v677 = vpop.f32.mrb[0].mxu0
    %678 = vdwg.mxu0
    %v679 = vld [vmem:[%s4] sm:$0xff]
    %v680 = vld [vmem:[%s4 + $0x8] sm:$0xff]
    %v681 = vld [vmem:[%s4 + $0x10] sm:$0xff]
    %v682 = vld [vmem:[%s4 + $0x18] sm:$0xff]
    %v684 = vsel %vm357, %v521, 0
    %v687 = vsel %vm357, %v526, 0
    %v690 = vsel %vm357, %v531, 0
    %v693 = vsel %vm357, %v536, 0
    %v696 = vsel %vm357, %v541, 0
    %v699 = vsel %vm357, %v546, 0
    %v702 = vsel %vm357, %v551, 0
    %v705 = vsel %vm357, %v556, 0
    %v708 = vsel %vm357, %v561, 0
    %v711 = vsel %vm357, %v566, 0
    %v714 = vsel %vm357, %v571, 0
    %v717 = vsel %vm357, %v576, 0
    %v720 = vsel %vm357, %v581, 0
    %v723 = vsel %vm357, %v586, 0
    %v726 = vsel %vm357, %v591, 0
    %v729 = vsel %vm357, %v596, 0
    %v732 = vsel %vm357, %v601, 0
    %v735 = vsel %vm357, %v606, 0
    %v738 = vsel %vm357, %v611, 0
    %v741 = vsel %vm357, %v616, 0
    %v744 = vsel %vm357, %v621, 0
    %v747 = vsel %vm357, %v626, 0
    %v750 = vsel %vm357, %v631, 0
    %v753 = vsel %vm357, %v636, 0
    %v756 = vsel %vm357, %v641, 0
    %v759 = vsel %vm357, %v646, 0
    %v762 = vsel %vm357, %v651, 0
    %v765 = vsel %vm357, %v656, 0
    %v768 = vsel %vm357, %v661, 0
    %v771 = vsel %vm357, %v666, 0
    %v774 = vsel %vm357, %v671, 0
    %v777 = vsel %vm357, %v676, 0
    %779 = vmatprep.subr.mxu0 %v680
    %780 = vmatpush1.msra.mxu0 %v679
    %781 = vmatprep.subr.mxu0 %v682
    %782 = vmatpush1.msra.mxu0 %v681
    %783 = vmatprep.subr.mxu0 0.0
    %784 = vmatpush1.msra.mxu0 0.0
    %785 = vmatprep.subr.mxu0 0.0
    %786 = vmatpush1.msra.mxu0 0.0
    %787 = vmatprep.subr.mxu0 0.0
    %788 = vmatpush1.msra.mxu0 0.0
    %789 = vmatprep.subr.mxu0 0.0
    %790 = vmatpush1.msra.mxu0 0.0
    %791 = vmatprep.subr.mxu0 0.0
    %792 = vmatpush1.msra.mxu0 0.0
    %793 = vmatprep.subr.mxu0 0.0
    %794 = vmatpush1.msra.mxu0 0.0
    %795 = vmatprep.subr.mxu0 0.0
    %796 = vmatpush1.msra.mxu0 0.0
    %797 = vmatprep.subr.mxu0 0.0
    %798 = vmatpush1.msra.mxu0 0.0
    %799 = vmatprep.subr.mxu0 0.0
    %800 = vmatpush1.msra.mxu0 0.0
    %801 = vmatprep.subr.mxu0 0.0
    %802 = vmatpush1.msra.mxu0 0.0
    %803 = vmatprep.subr.mxu0 0.0
    %804 = vmatpush1.msra.mxu0 0.0
    %805 = vmatprep.subr.mxu0 0.0
    %806 = vmatpush1.msra.mxu0 0.0
    %807 = vmatprep.subr.mxu0 0.0
    %808 = vmatpush1.msra.mxu0 0.0
    %809 = vmatprep.subr.mxu0 0.0
    %810 = vmatpush1.msra.mxu0 0.0
    %811 = vmatprep.subr.mxu0 0.0
    %812 = vmatpush1.msra.mxu0 0.0
    %813 = vmatprep.subr.mxu0 0.0
    %814 = vmatpush1.msra.mxu0 0.0
    %815 = vmatprep.subr.mxu0 0.0
    %816 = vmatpush1.msra.mxu0 0.0
    %817 = vmatprep.subr.mxu0 0.0
    %818 = vmatpush1.msra.mxu0 0.0
    %819 = vmatprep.subr.mxu0 0.0
    %820 = vmatpush1.msra.mxu0 0.0
    %821 = vmatprep.subr.mxu0 0.0
    %822 = vmatpush1.msra.mxu0 0.0
    %823 = vmatprep.subr.mxu0 0.0
    %824 = vmatpush1.msra.mxu0 0.0
    %825 = vmatprep.subr.mxu0 0.0
    %826 = vmatpush1.msra.mxu0 0.0
    %827 = vmatprep.subr.mxu0 0.0
    %828 = vmatpush1.msra.mxu0 0.0
    %829 = vmatprep.subr.mxu0 0.0
    %830 = vmatpush1.msra.mxu0 0.0
    %831 = vmatprep.subr.mxu0 0.0
    %832 = vmatpush1.msra.mxu0 0.0
    %833 = vmatprep.subr.mxu0 0.0
    %834 = vmatpush1.msra.mxu0 0.0
    %835 = vmatprep.subr.mxu0 0.0
    %836 = vmatpush1.msra.mxu0 0.0
    %837 = vmatprep.subr.mxu0 0.0
    %838 = vmatpush1.msra.mxu0 0.0
    %839 = vmatprep.subr.mxu0 0.0
    %840 = vmatpush1.msra.mxu0 0.0
    %841 = vmatprep.subr.mxu0 0.0
    %842 = vmatpush1.msra.mxu0 0.0
    %843 = vmatprep.mubr.f32.mxu0 0.0
    %844 = vmatmul.mubr.f32.gmra.mrb[0].mxu0 %v684
    %v845 = vpop.f32.mrb[0].mxu0
    %v846 = vadd.f32 0.0, %v845
    %v847 = vpop.f32.mrb[0].mxu0
    %v848 = vadd.f32 0.0, %v847
    %849 = vmatprep.mubr.f32.mxu0 0.0
    %850 = vmatmul.mubr.f32.gmra.mrb[0].mxu0 %v687
    %v851 = vpop.f32.mrb[0].mxu0
    %v852 = vadd.f32 0.0, %v851
    %v853 = vpop.f32.mrb[0].mxu0
    %v854 = vadd.f32 0.0, %v853
    %855 = vmatprep.mubr.f32.mxu0 0.0
    %856 = vmatmul.mubr.f32.gmra.mrb[0].mxu0 %v690
    %v857 = vpop.f32.mrb[0].mxu0
    %v858 = vadd.f32 0.0, %v857
    %v859 = vpop.f32.mrb[0].mxu0
    %v860 = vadd.f32 0.0, %v859
    %861 = vmatprep.mubr.f32.mxu0 0.0
    %862 = vmatmul.mubr.f32.gmra.mrb[0].mxu0 %v693
    %v863 = vpop.f32.mrb[0].mxu0
    %v864 = vadd.f32 0.0, %v863
    %v865 = vpop.f32.mrb[0].mxu0
    %v866 = vadd.f32 0.0, %v865
    %867 = vmatprep.mubr.f32.mxu0 0.0
    %868 = vmatmul.mubr.f32.gmra.mrb[0].mxu0 %v696
    %v869 = vpop.f32.mrb[0].mxu0
    %v870 = vadd.f32 0.0, %v869
    %v871 = vpop.f32.mrb[0].mxu0
    %v872 = vadd.f32 0.0, %v871
    %873 = vmatprep.mubr.f32.mxu0 0.0
    %874 = vmatmul.mubr.f32.gmra.mrb[0].mxu0 %v699
    %v875 = vpop.f32.mrb[0].mxu0
    %v876 = vadd.f32 0.0, %v875
    %v877 = vpop.f32.mrb[0].mxu0
    %v878 = vadd.f32 0.0, %v877
    %879 = vmatprep.mubr.f32.mxu0 0.0
    %880 = vmatmul.mubr.f32.gmra.mrb[0].mxu0 %v702
    %v881 = vpop.f32.mrb[0].mxu0
    %v882 = vadd.f32 0.0, %v881
    %v883 = vpop.f32.mrb[0].mxu0
    %v884 = vadd.f32 0.0, %v883
    %885 = vmatprep.mubr.f32.mxu0 0.0
    %886 = vmatmul.mubr.f32.gmra.mrb[0].mxu0 %v705
    %v887 = vpop.f32.mrb[0].mxu0
    %v888 = vadd.f32 0.0, %v887
    %v889 = vpop.f32.mrb[0].mxu0
    %v890 = vadd.f32 0.0, %v889
    %891 = vmatprep.mubr.f32.mxu0 0.0
    %892 = vmatmul.mubr.f32.gmra.mrb[0].mxu0 %v708
    %v893 = vpop.f32.mrb[0].mxu0
    %v894 = vadd.f32 0.0, %v893
    %v895 = vpop.f32.mrb[0].mxu0
    %v896 = vadd.f32 0.0, %v895
    %897 = vmatprep.mubr.f32.mxu0 0.0
    %898 = vmatmul.mubr.f32.gmra.mrb[0].mxu0 %v711
    %v899 = vpop.f32.mrb[0].mxu0
    %v900 = vadd.f32 0.0, %v899
    %v901 = vpop.f32.mrb[0].mxu0
    %v902 = vadd.f32 0.0, %v901
    %903 = vmatprep.mubr.f32.mxu0 0.0
    %904 = vmatmul.mubr.f32.gmra.mrb[0].mxu0 %v714
    %v905 = vpop.f32.mrb[0].mxu0
    %v906 = vadd.f32 0.0, %v905
    %v907 = vpop.f32.mrb[0].mxu0
    %v908 = vadd.f32 0.0, %v907
    %909 = vmatprep.mubr.f32.mxu0 0.0
    %910 = vmatmul.mubr.f32.gmra.mrb[0].mxu0 %v717
    %v911 = vpop.f32.mrb[0].mxu0
    %v912 = vadd.f32 0.0, %v911
    %v913 = vpop.f32.mrb[0].mxu0
    %v914 = vadd.f32 0.0, %v913
    %915 = vmatprep.mubr.f32.mxu0 0.0
    %916 = vmatmul.mubr.f32.gmra.mrb[0].mxu0 %v720
    %v917 = vpop.f32.mrb[0].mxu0
    %v918 = vadd.f32 0.0, %v917
    %v919 = vpop.f32.mrb[0].mxu0
    %v920 = vadd.f32 0.0, %v919
    %921 = vmatprep.mubr.f32.mxu0 0.0
    %922 = vmatmul.mubr.f32.gmra.mrb[0].mxu0 %v723
    %v923 = vpop.f32.mrb[0].mxu0
    %v924 = vadd.f32 0.0, %v923
    %v925 = vpop.f32.mrb[0].mxu0
    %v926 = vadd.f32 0.0, %v925
    %927 = vmatprep.mubr.f32.mxu0 0.0
    %928 = vmatmul.mubr.f32.gmra.mrb[0].mxu0 %v726
    %v929 = vpop.f32.mrb[0].mxu0
    %v930 = vadd.f32 0.0, %v929
    %v931 = vpop.f32.mrb[0].mxu0
    %v932 = vadd.f32 0.0, %v931
    %933 = vmatprep.mubr.f32.mxu0 0.0
    %934 = vmatmul.mubr.f32.gmra.mrb[0].mxu0 %v729
    %v935 = vpop.f32.mrb[0].mxu0
    %v936 = vadd.f32 0.0, %v935
    %v937 = vpop.f32.mrb[0].mxu0
    %v938 = vadd.f32 0.0, %v937
    %939 = vmatprep.mubr.f32.mxu0 0.0
    %940 = vmatmul.mubr.f32.gmra.mrb[0].mxu0 %v732
    %v941 = vpop.f32.mrb[0].mxu0
    %v942 = vadd.f32 0.0, %v941
    %v943 = vpop.f32.mrb[0].mxu0
    %v944 = vadd.f32 0.0, %v943
    %945 = vmatprep.mubr.f32.mxu0 0.0
    %946 = vmatmul.mubr.f32.gmra.mrb[0].mxu0 %v735
    %v947 = vpop.f32.mrb[0].mxu0
    %v948 = vadd.f32 0.0, %v947
    %v949 = vpop.f32.mrb[0].mxu0
    %v950 = vadd.f32 0.0, %v949
    %951 = vmatprep.mubr.f32.mxu0 0.0
    %952 = vmatmul.mubr.f32.gmra.mrb[0].mxu0 %v738
    %v953 = vpop.f32.mrb[0].mxu0
    %v954 = vadd.f32 0.0, %v953
    %v955 = vpop.f32.mrb[0].mxu0
    %v956 = vadd.f32 0.0, %v955
    %957 = vmatprep.mubr.f32.mxu0 0.0
    %958 = vmatmul.mubr.f32.gmra.mrb[0].mxu0 %v741
    %v959 = vpop.f32.mrb[0].mxu0
    %v960 = vadd.f32 0.0, %v959
    %v961 = vpop.f32.mrb[0].mxu0
    %v962 = vadd.f32 0.0, %v961
    %963 = vmatprep.mubr.f32.mxu0 0.0
    %964 = vmatmul.mubr.f32.gmra.mrb[0].mxu0 %v744
    %v965 = vpop.f32.mrb[0].mxu0
    %v966 = vadd.f32 0.0, %v965
    %v967 = vpop.f32.mrb[0].mxu0
    %v968 = vadd.f32 0.0, %v967
    %969 = vmatprep.mubr.f32.mxu0 0.0
    %970 = vmatmul.mubr.f32.gmra.mrb[0].mxu0 %v747
    %v971 = vpop.f32.mrb[0].mxu0
    %v972 = vadd.f32 0.0, %v971
    %v973 = vpop.f32.mrb[0].mxu0
    %v974 = vadd.f32 0.0, %v973
    %975 = vmatprep.mubr.f32.mxu0 0.0
    %976 = vmatmul.mubr.f32.gmra.mrb[0].mxu0 %v750
    %v977 = vpop.f32.mrb[0].mxu0
    %v978 = vadd.f32 0.0, %v977
    %v979 = vpop.f32.mrb[0].mxu0
    %v980 = vadd.f32 0.0, %v979
    %981 = vmatprep.mubr.f32.mxu0 0.0
    %982 = vmatmul.mubr.f32.gmra.mrb[0].mxu0 %v753
    %v983 = vpop.f32.mrb[0].mxu0
    %v984 = vadd.f32 0.0, %v983
    %v985 = vpop.f32.mrb[0].mxu0
    %v986 = vadd.f32 0.0, %v985
    %987 = vmatprep.mubr.f32.mxu0 0.0
    %988 = vmatmul.mubr.f32.gmra.mrb[0].mxu0 %v756
    %v989 = vpop.f32.mrb[0].mxu0
    %v990 = vadd.f32 0.0, %v989
    %v991 = vpop.f32.mrb[0].mxu0
    %v992 = vadd.f32 0.0, %v991
    %993 = vmatprep.mubr.f32.mxu0 0.0
    %994 = vmatmul.mubr.f32.gmra.mrb[0].mxu0 %v759
    %v995 = vpop.f32.mrb[0].mxu0
    %v996 = vadd.f32 0.0, %v995
    %v997 = vpop.f32.mrb[0].mxu0
    %v998 = vadd.f32 0.0, %v997
    %999 = vmatprep.mubr.f32.mxu0 0.0
    %1000 = vmatmul.mubr.f32.gmra.mrb[0].mxu0 %v762
    %v1001 = vpop.f32.mrb[0].mxu0
    %v1002 = vadd.f32 0.0, %v1001
    %v1003 = vpop.f32.mrb[0].mxu0
    %v1004 = vadd.f32 0.0, %v1003
    %1005 = vmatprep.mubr.f32.mxu0 0.0
    %1006 = vmatmul.mubr.f32.gmra.mrb[0].mxu0 %v765
    %v1007 = vpop.f32.mrb[0].mxu0
    %v1008 = vadd.f32 0.0, %v1007
    %v1009 = vpop.f32.mrb[0].mxu0
    %v1010 = vadd.f32 0.0, %v1009
    %1011 = vmatprep.mubr.f32.mxu0 0.0
    %1012 = vmatmul.mubr.f32.gmra.mrb[0].mxu0 %v768
    %v1013 = vpop.f32.mrb[0].mxu0
    %v1014 = vadd.f32 0.0, %v1013
    %v1015 = vpop.f32.mrb[0].mxu0
    %v1016 = vadd.f32 0.0, %v1015
    %1017 = vmatprep.mubr.f32.mxu0 0.0
    %1018 = vmatmul.mubr.f32.gmra.mrb[0].mxu0 %v771
    %v1019 = vpop.f32.mrb[0].mxu0
    %v1020 = vadd.f32 0.0, %v1019
    %v1021 = vpop.f32.mrb[0].mxu0
    %v1022 = vadd.f32 0.0, %v1021
    %1023 = vmatprep.mubr.f32.mxu0 0.0
    %1024 = vmatmul.mubr.f32.gmra.mrb[0].mxu0 %v774
    %v1025 = vpop.f32.mrb[0].mxu0
    %v1026 = vadd.f32 0.0, %v1025
    %v1027 = vpop.f32.mrb[0].mxu0
    %v1028 = vadd.f32 0.0, %v1027
    %1029 = vmatprep.mubr.f32.mxu0 0.0
    %1030 = vmatmul.mubr.f32.gmra.mrb[0].mxu0 %v777
    %v1031 = vpop.f32.mrb[0].mxu0
    %v1032 = vadd.f32 0.0, %v1031
    %v1033 = vpop.f32.mrb[0].mxu0
    %v1034 = vadd.f32 0.0, %v1033
    %1035 = vdwg.mxu0
    %s1036 = smul.u32 8, 32
    %s1037 = smul.u32 %s1036, 2
    %s1038 = sshll.u32 %s1037, 4
    %1039 = dma.done [#allocation4], %s1038
    %v1040 = vld [vmem:[#allocation3] sm:$0xff]
    %v1041 = vld [vmem:[#allocation3 + $0x8] sm:$0xff]
    %v1042 = vld [vmem:[#allocation3 + $0x10] sm:$0xff]
    %v1043 = vld [vmem:[#allocation3 + $0x18] sm:$0xff]
    %v1044 = vld [vmem:[#allocation3 + $0x20] sm:$0xff]
    %v1045 = vld [vmem:[#allocation3 + $0x28] sm:$0xff]
    %v1046 = vld [vmem:[#allocation3 + $0x30] sm:$0xff]
    %v1047 = vld [vmem:[#allocation3 + $0x38] sm:$0xff]
    %v1048 = vld [vmem:[#allocation3 + $0x40] sm:$0xff]
    %v1049 = vld [vmem:[#allocation3 + $0x48] sm:$0xff]
    %v1050 = vld [vmem:[#allocation3 + $0x50] sm:$0xff]
    %v1051 = vld [vmem:[#allocation3 + $0x58] sm:$0xff]
    %v1052 = vld [vmem:[#allocation3 + $0x60] sm:$0xff]
    %v1053 = vld [vmem:[#allocation3 + $0x68] sm:$0xff]
    %v1054 = vld [vmem:[#allocation3 + $0x70] sm:$0xff]
    %v1055 = vld [vmem:[#allocation3 + $0x78] sm:$0xff]
    %v1056 = vld [vmem:[#allocation3 + $0x80] sm:$0xff]
    %v1057 = vld [vmem:[#allocation3 + $0x88] sm:$0xff]
    %v1058 = vld [vmem:[#allocation3 + $0x90] sm:$0xff]
    %v1059 = vld [vmem:[#allocation3 + $0x98] sm:$0xff]
    %v1060 = vld [vmem:[#allocation3 + $0xa0] sm:$0xff]
    %v1061 = vld [vmem:[#allocation3 + $0xa8] sm:$0xff]
    %v1062 = vld [vmem:[#allocation3 + $0xb0] sm:$0xff]
    %v1063 = vld [vmem:[#allocation3 + $0xb8] sm:$0xff]
    %v1064 = vld [vmem:[#allocation3 + $0xc0] sm:$0xff]
    %v1065 = vld [vmem:[#allocation3 + $0xc8] sm:$0xff]
    %v1066 = vld [vmem:[#allocation3 + $0xd0] sm:$0xff]
    %v1067 = vld [vmem:[#allocation3 + $0xd8] sm:$0xff]
    %v1068 = vld [vmem:[#allocation3 + $0xe0] sm:$0xff]
    %v1069 = vld [vmem:[#allocation3 + $0xe8] sm:$0xff]
    %v1070 = vld [vmem:[#allocation3 + $0xf0] sm:$0xff]
    %v1071 = vld [vmem:[#allocation3 + $0xf8] sm:$0xff]
    %v1072 = vld [vmem:[#allocation3 + $0x100] sm:$0xff]
    %v1073 = vld [vmem:[#allocation3 + $0x108] sm:$0xff]
    %v1074 = vld [vmem:[#allocation3 + $0x110] sm:$0xff]
    %v1075 = vld [vmem:[#allocation3 + $0x118] sm:$0xff]
    %v1076 = vld [vmem:[#allocation3 + $0x120] sm:$0xff]
    %v1077 = vld [vmem:[#allocation3 + $0x128] sm:$0xff]
    %v1078 = vld [vmem:[#allocation3 + $0x130] sm:$0xff]
    %v1079 = vld [vmem:[#allocation3 + $0x138] sm:$0xff]
    %v1080 = vld [vmem:[#allocation3 + $0x140] sm:$0xff]
    %v1081 = vld [vmem:[#allocation3 + $0x148] sm:$0xff]
    %v1082 = vld [vmem:[#allocation3 + $0x150] sm:$0xff]
    %v1083 = vld [vmem:[#allocation3 + $0x158] sm:$0xff]
    %v1084 = vld [vmem:[#allocation3 + $0x160] sm:$0xff]
    %v1085 = vld [vmem:[#allocation3 + $0x168] sm:$0xff]
    %v1086 = vld [vmem:[#allocation3 + $0x170] sm:$0xff]
    %v1087 = vld [vmem:[#allocation3 + $0x178] sm:$0xff]
    %v1088 = vld [vmem:[#allocation3 + $0x180] sm:$0xff]
    %v1089 = vld [vmem:[#allocation3 + $0x188] sm:$0xff]
    %v1090 = vld [vmem:[#allocation3 + $0x190] sm:$0xff]
    %v1091 = vld [vmem:[#allocation3 + $0x198] sm:$0xff]
    %v1092 = vld [vmem:[#allocation3 + $0x1a0] sm:$0xff]
    %v1093 = vld [vmem:[#allocation3 + $0x1a8] sm:$0xff]
    %v1094 = vld [vmem:[#allocation3 + $0x1b0] sm:$0xff]
    %v1095 = vld [vmem:[#allocation3 + $0x1b8] sm:$0xff]
    %v1096 = vld [vmem:[#allocation3 + $0x1c0] sm:$0xff]
    %v1097 = vld [vmem:[#allocation3 + $0x1c8] sm:$0xff]
    %v1098 = vld [vmem:[#allocation3 + $0x1d0] sm:$0xff]
    %v1099 = vld [vmem:[#allocation3 + $0x1d8] sm:$0xff]
    %v1100 = vld [vmem:[#allocation3 + $0x1e0] sm:$0xff]
    %v1101 = vld [vmem:[#allocation3 + $0x1e8] sm:$0xff]
    %v1102 = vld [vmem:[#allocation3 + $0x1f0] sm:$0xff]
    %v1103 = vld [vmem:[#allocation3 + $0x1f8] sm:$0xff]
    %v1104 = vmul.f32 %v1040, 0.15
    %v1105 = vmul.f32 %v1041, 0.15
    %v1106 = vmul.f32 %v1042, 0.15
    %v1107 = vmul.f32 %v1043, 0.15
    %v1108 = vmul.f32 %v1044, 0.15
    %v1109 = vmul.f32 %v1045, 0.15
    %v1110 = vmul.f32 %v1046, 0.15
    %v1111 = vmul.f32 %v1047, 0.15
    %v1112 = vmul.f32 %v1048, 0.15
    %v1113 = vmul.f32 %v1049, 0.15
    %v1114 = vmul.f32 %v1050, 0.15
    %v1115 = vmul.f32 %v1051, 0.15
    %v1116 = vmul.f32 %v1052, 0.15
    %v1117 = vmul.f32 %v1053, 0.15
    %v1118 = vmul.f32 %v1054, 0.15
    %v1119 = vmul.f32 %v1055, 0.15
    %v1120 = vmul.f32 %v1056, 0.15
    %v1121 = vmul.f32 %v1057, 0.15
    %v1122 = vmul.f32 %v1058, 0.15
    %v1123 = vmul.f32 %v1059, 0.15
    %v1124 = vmul.f32 %v1060, 0.15
    %v1125 = vmul.f32 %v1061, 0.15
    %v1126 = vmul.f32 %v1062, 0.15
    %v1127 = vmul.f32 %v1063, 0.15
    %v1128 = vmul.f32 %v1064, 0.15
    %v1129 = vmul.f32 %v1065, 0.15
    %v1130 = vmul.f32 %v1066, 0.15
    %v1131 = vmul.f32 %v1067, 0.15
    %v1132 = vmul.f32 %v1068, 0.15
    %v1133 = vmul.f32 %v1069, 0.15
    %v1134 = vmul.f32 %v1070, 0.15
    %v1135 = vmul.f32 %v1071, 0.15
    %v1136 = vmul.f32 %v1072, 0.15
    %v1137 = vmul.f32 %v1073, 0.15
    %v1138 = vmul.f32 %v1074, 0.15
    %v1139 = vmul.f32 %v1075, 0.15
    %v1140 = vmul.f32 %v1076, 0.15
    %v1141 = vmul.f32 %v1077, 0.15
    %v1142 = vmul.f32 %v1078, 0.15
    %v1143 = vmul.f32 %v1079, 0.15
    %v1144 = vmul.f32 %v1080, 0.15
    %v1145 = vmul.f32 %v1081, 0.15
    %v1146 = vmul.f32 %v1082, 0.15
    %v1147 = vmul.f32 %v1083, 0.15
    %v1148 = vmul.f32 %v1084, 0.15
    %v1149 = vmul.f32 %v1085, 0.15
    %v1150 = vmul.f32 %v1086, 0.15
    %v1151 = vmul.f32 %v1087, 0.15
    %v1152 = vmul.f32 %v1088, 0.15
    %v1153 = vmul.f32 %v1089, 0.15
    %v1154 = vmul.f32 %v1090, 0.15
    %v1155 = vmul.f32 %v1091, 0.15
    %v1156 = vmul.f32 %v1092, 0.15
    %v1157 = vmul.f32 %v1093, 0.15
    %v1158 = vmul.f32 %v1094, 0.15
    %v1159 = vmul.f32 %v1095, 0.15
    %v1160 = vmul.f32 %v1096, 0.15
    %v1161 = vmul.f32 %v1097, 0.15
    %v1162 = vmul.f32 %v1098, 0.15
    %v1163 = vmul.f32 %v1099, 0.15
    %v1164 = vmul.f32 %v1100, 0.15
    %v1165 = vmul.f32 %v1101, 0.15
    %v1166 = vmul.f32 %v1102, 0.15
    %v1167 = vmul.f32 %v1103, 0.15
    %v1168 = vadd.f32 %v846, %v1104
    %v1169 = vadd.f32 %v848, %v1105
    %v1170 = vadd.f32 %v852, %v1106
    %v1171 = vadd.f32 %v854, %v1107
    %v1172 = vadd.f32 %v858, %v1108
    %v1173 = vadd.f32 %v860, %v1109
    %v1174 = vadd.f32 %v864, %v1110
    %v1175 = vadd.f32 %v866, %v1111
    %v1176 = vadd.f32 %v870, %v1112
    %v1177 = vadd.f32 %v872, %v1113
    %v1178 = vadd.f32 %v876, %v1114
    %v1179 = vadd.f32 %v878, %v1115
    %v1180 = vadd.f32 %v882, %v1116
    %v1181 = vadd.f32 %v884, %v1117
    %v1182 = vadd.f32 %v888, %v1118
    %v1183 = vadd.f32 %v890, %v1119
    %v1184 = vadd.f32 %v894, %v1120
    %v1185 = vadd.f32 %v896, %v1121
    %v1186 = vadd.f32 %v900, %v1122
    %v1187 = vadd.f32 %v902, %v1123
    %v1188 = vadd.f32 %v906, %v1124
    %v1189 = vadd.f32 %v908, %v1125
    %v1190 = vadd.f32 %v912, %v1126
    %v1191 = vadd.f32 %v914, %v1127
    %v1192 = vadd.f32 %v918, %v1128
    %v1193 = vadd.f32 %v920, %v1129
    %v1194 = vadd.f32 %v924, %v1130
    %v1195 = vadd.f32 %v926, %v1131
    %v1196 = vadd.f32 %v930, %v1132
    %v1197 = vadd.f32 %v932, %v1133
    %v1198 = vadd.f32 %v936, %v1134
    %v1199 = vadd.f32 %v938, %v1135
    %v1200 = vadd.f32 %v942, %v1136
    %v1201 = vadd.f32 %v944, %v1137
    %v1202 = vadd.f32 %v948, %v1138
    %v1203 = vadd.f32 %v950, %v1139
    %v1204 = vadd.f32 %v954, %v1140
    %v1205 = vadd.f32 %v956, %v1141
    %v1206 = vadd.f32 %v960, %v1142
    %v1207 = vadd.f32 %v962, %v1143
    %v1208 = vadd.f32 %v966, %v1144
    %v1209 = vadd.f32 %v968, %v1145
    %v1210 = vadd.f32 %v972, %v1146
    %v1211 = vadd.f32 %v974, %v1147
    %v1212 = vadd.f32 %v978, %v1148
    %v1213 = vadd.f32 %v980, %v1149
    %v1214 = vadd.f32 %v984, %v1150
    %v1215 = vadd.f32 %v986, %v1151
    %v1216 = vadd.f32 %v990, %v1152
    %v1217 = vadd.f32 %v992, %v1153
    %v1218 = vadd.f32 %v996, %v1154
    %v1219 = vadd.f32 %v998, %v1155
    %v1220 = vadd.f32 %v1002, %v1156
    %v1221 = vadd.f32 %v1004, %v1157
    %v1222 = vadd.f32 %v1008, %v1158
    %v1223 = vadd.f32 %v1010, %v1159
    %v1224 = vadd.f32 %v1014, %v1160
    %v1225 = vadd.f32 %v1016, %v1161
    %v1226 = vadd.f32 %v1020, %v1162
    %v1227 = vadd.f32 %v1022, %v1163
    %v1228 = vadd.f32 %v1026, %v1164
    %v1229 = vadd.f32 %v1028, %v1165
    %v1230 = vadd.f32 %v1032, %v1166
    %v1231 = vadd.f32 %v1034, %v1167
    %1232 = vst [vmem:[#allocation9] sm:$0xff] %v1168
    %1233 = vst [vmem:[#allocation9 + $0x8] sm:$0xff] %v1169
    %1234 = vst [vmem:[#allocation9 + $0x10] sm:$0xff] %v1170
    %1235 = vst [vmem:[#allocation9 + $0x18] sm:$0xff] %v1171
    %1236 = vst [vmem:[#allocation9 + $0x20] sm:$0xff] %v1172
    %1237 = vst [vmem:[#allocation9 + $0x28] sm:$0xff] %v1173
    %1238 = vst [vmem:[#allocation9 + $0x30] sm:$0xff] %v1174
    %1239 = vst [vmem:[#allocation9 + $0x38] sm:$0xff] %v1175
    %1240 = vst [vmem:[#allocation9 + $0x40] sm:$0xff] %v1176
    %1241 = vst [vmem:[#allocation9 + $0x48] sm:$0xff] %v1177
    %1242 = vst [vmem:[#allocation9 + $0x50] sm:$0xff] %v1178
    %1243 = vst [vmem:[#allocation9 + $0x58] sm:$0xff] %v1179
    %1244 = vst [vmem:[#allocation9 + $0x60] sm:$0xff] %v1180
    %1245 = vst [vmem:[#allocation9 + $0x68] sm:$0xff] %v1181
    %1246 = vst [vmem:[#allocation9 + $0x70] sm:$0xff] %v1182
    %1247 = vst [vmem:[#allocation9 + $0x78] sm:$0xff] %v1183
    %1248 = vst [vmem:[#allocation9 + $0x80] sm:$0xff] %v1184
    %1249 = vst [vmem:[#allocation9 + $0x88] sm:$0xff] %v1185
    %1250 = vst [vmem:[#allocation9 + $0x90] sm:$0xff] %v1186
    %1251 = vst [vmem:[#allocation9 + $0x98] sm:$0xff] %v1187
    %1252 = vst [vmem:[#allocation9 + $0xa0] sm:$0xff] %v1188
    %1253 = vst [vmem:[#allocation9 + $0xa8] sm:$0xff] %v1189
    %1254 = vst [vmem:[#allocation9 + $0xb0] sm:$0xff] %v1190
    %1255 = vst [vmem:[#allocation9 + $0xb8] sm:$0xff] %v1191
    %1256 = vst [vmem:[#allocation9 + $0xc0] sm:$0xff] %v1192
    %1257 = vst [vmem:[#allocation9 + $0xc8] sm:$0xff] %v1193
    %1258 = vst [vmem:[#allocation9 + $0xd0] sm:$0xff] %v1194
    %1259 = vst [vmem:[#allocation9 + $0xd8] sm:$0xff] %v1195
    %1260 = vst [vmem:[#allocation9 + $0xe0] sm:$0xff] %v1196
    %1261 = vst [vmem:[#allocation9 + $0xe8] sm:$0xff] %v1197
    %1262 = vst [vmem:[#allocation9 + $0xf0] sm:$0xff] %v1198
    %1263 = vst [vmem:[#allocation9 + $0xf8] sm:$0xff] %v1199
    %1264 = vst [vmem:[#allocation9 + $0x100] sm:$0xff] %v1200
    %1265 = vst [vmem:[#allocation9 + $0x108] sm:$0xff] %v1201
    %1266 = vst [vmem:[#allocation9 + $0x110] sm:$0xff] %v1202
    %1267 = vst [vmem:[#allocation9 + $0x118] sm:$0xff] %v1203
    %1268 = vst [vmem:[#allocation9 + $0x120] sm:$0xff] %v1204
    %1269 = vst [vmem:[#allocation9 + $0x128] sm:$0xff] %v1205
    %1270 = vst [vmem:[#allocation9 + $0x130] sm:$0xff] %v1206
    %1271 = vst [vmem:[#allocation9 + $0x138] sm:$0xff] %v1207
    %1272 = vst [vmem:[#allocation9 + $0x140] sm:$0xff] %v1208
    %1273 = vst [vmem:[#allocation9 + $0x148] sm:$0xff] %v1209
    %1274 = vst [vmem:[#allocation9 + $0x150] sm:$0xff] %v1210
    %1275 = vst [vmem:[#allocation9 + $0x158] sm:$0xff] %v1211
    %1276 = vst [vmem:[#allocation9 + $0x160] sm:$0xff] %v1212
    %1277 = vst [vmem:[#allocation9 + $0x168] sm:$0xff] %v1213
    %1278 = vst [vmem:[#allocation9 + $0x170] sm:$0xff] %v1214
    %1279 = vst [vmem:[#allocation9 + $0x178] sm:$0xff] %v1215
    %1280 = vst [vmem:[#allocation9 + $0x180] sm:$0xff] %v1216
    %1281 = vst [vmem:[#allocation9 + $0x188] sm:$0xff] %v1217
    %1282 = vst [vmem:[#allocation9 + $0x190] sm:$0xff] %v1218
    %1283 = vst [vmem:[#allocation9 + $0x198] sm:$0xff] %v1219
    %1284 = vst [vmem:[#allocation9 + $0x1a0] sm:$0xff] %v1220
    %1285 = vst [vmem:[#allocation9 + $0x1a8] sm:$0xff] %v1221
    %1286 = vst [vmem:[#allocation9 + $0x1b0] sm:$0xff] %v1222
    %1287 = vst [vmem:[#allocation9 + $0x1b8] sm:$0xff] %v1223
    %1288 = vst [vmem:[#allocation9 + $0x1c0] sm:$0xff] %v1224
    %1289 = vst [vmem:[#allocation9 + $0x1c8] sm:$0xff] %v1225
    %1290 = vst [vmem:[#allocation9 + $0x1d0] sm:$0xff] %v1226
    %1291 = vst [vmem:[#allocation9 + $0x1d8] sm:$0xff] %v1227
    %1292 = vst [vmem:[#allocation9 + $0x1e0] sm:$0xff] %v1228
    %1293 = vst [vmem:[#allocation9 + $0x1e8] sm:$0xff] %v1229
    %1294 = vst [vmem:[#allocation9 + $0x1f0] sm:$0xff] %v1230
    %1295 = vst [vmem:[#allocation9 + $0x1f8] sm:$0xff] %v1231
    %v1296 = vmax.f32 %v846, %v858
    %v1297 = vmax.f32 %v848, %v860
    %v1298 = vmax.f32 %v852, %v864
    %v1299 = vmax.f32 %v854, %v866
    %v1300 = vmax.f32 %v1296, %v870
    %v1301 = vmax.f32 %v1297, %v872
    %v1302 = vmax.f32 %v1298, %v876
    %v1303 = vmax.f32 %v1299, %v878
    %v1304 = vmax.f32 %v1300, %v882
    %v1305 = vmax.f32 %v1301, %v884
    %v1306 = vmax.f32 %v1302, %v888
    %v1307 = vmax.f32 %v1303, %v890
    %v1308 = vmax.f32 %v1304, %v894
    %v1309 = vmax.f32 %v1305, %v896
    %v1310 = vmax.f32 %v1306, %v900
    %v1311 = vmax.f32 %v1307, %v902
    %v1312 = vmax.f32 %v1308, %v906
    %v1313 = vmax.f32 %v1309, %v908
    %v1314 = vmax.f32 %v1310, %v912
    %v1315 = vmax.f32 %v1311, %v914
    %v1316 = vmax.f32 %v1312, %v918
    %v1317 = vmax.f32 %v1313, %v920
    %v1318 = vmax.f32 %v1314, %v924
    %v1319 = vmax.f32 %v1315, %v926
    %v1320 = vmax.f32 %v1316, %v930
    %v1321 = vmax.f32 %v1317, %v932
    %v1322 = vmax.f32 %v1318, %v936
    %v1323 = vmax.f32 %v1319, %v938
    %v1324 = vmax.f32 %v1320, %v942
    %v1325 = vmax.f32 %v1321, %v944
    %v1326 = vmax.f32 %v1322, %v948
    %v1327 = vmax.f32 %v1323, %v950
    %v1328 = vmax.f32 %v1324, %v954
    %v1329 = vmax.f32 %v1325, %v956
    %v1330 = vmax.f32 %v1326, %v960
    %v1331 = vmax.f32 %v1327, %v962
    %v1332 = vmax.f32 %v1328, %v966
    %v1333 = vmax.f32 %v1329, %v968
    %v1334 = vmax.f32 %v1330, %v972
    %v1335 = vmax.f32 %v1331, %v974
    %v1336 = vmax.f32 %v1332, %v978
    %v1337 = vmax.f32 %v1333, %v980
    %v1338 = vmax.f32 %v1334, %v984
    %v1339 = vmax.f32 %v1335, %v986
    %v1340 = vmax.f32 %v1336, %v990
    %v1341 = vmax.f32 %v1337, %v992
    %v1342 = vmax.f32 %v1338, %v996
    %v1343 = vmax.f32 %v1339, %v998
    %v1344 = vmax.f32 %v1340, %v1002
    %v1345 = vmax.f32 %v1341, %v1004
    %v1346 = vmax.f32 %v1342, %v1008
    %v1347 = vmax.f32 %v1343, %v1010
    %v1348 = vmax.f32 %v1344, %v1014
    %v1349 = vmax.f32 %v1345, %v1016
    %v1350 = vmax.f32 %v1346, %v1020
    %v1351 = vmax.f32 %v1347, %v1022
    %v1352 = vmax.f32 %v1348, %v1026
    %v1353 = vmax.f32 %v1349, %v1028
    %v1354 = vmax.f32 %v1350, %v1032
    %v1355 = vmax.f32 %v1351, %v1034
    %v1356 = vmax.f32 %v1352, %v1353
    %v1357 = vmax.f32 %v1354, %v1355
    %v1358 = vmax.f32 %v1356, %v1357
    %1359 = vmax.xlane.f32.xlu0 %v1358
    %v1360 = vpop.xlane.xlu0 %1359
    %v1361 = vrot.slane %v1360, 4
    %v1362 = vmax.f32 %v1360, %v1361
    %v1363 = vrot.slane %v1362, 2
    %v1364 = vmax.f32 %v1362, %v1363
    %v1365 = vrot.slane %v1364, 1
    %v1366 = vmax.f32 %v1364, %v1365
    %s1367 = vtos %v1366
    %v1368 = vmax.f32 %v1040, %v1044
    %v1369 = vmax.f32 %v1041, %v1045
    %v1370 = vmax.f32 %v1042, %v1046
    %v1371 = vmax.f32 %v1043, %v1047
    %v1372 = vmax.f32 %v1368, %v1048
    %v1373 = vmax.f32 %v1369, %v1049
    %v1374 = vmax.f32 %v1370, %v1050
    %v1375 = vmax.f32 %v1371, %v1051
    %v1376 = vmax.f32 %v1372, %v1052
    %v1377 = vmax.f32 %v1373, %v1053
    %v1378 = vmax.f32 %v1374, %v1054
    %v1379 = vmax.f32 %v1375, %v1055
    %v1380 = vmax.f32 %v1376, %v1056
    %v1381 = vmax.f32 %v1377, %v1057
    %v1382 = vmax.f32 %v1378, %v1058
    %v1383 = vmax.f32 %v1379, %v1059
    %v1384 = vmax.f32 %v1380, %v1060
    %v1385 = vmax.f32 %v1381, %v1061
    %v1386 = vmax.f32 %v1382, %v1062
    %v1387 = vmax.f32 %v1383, %v1063
    %v1388 = vmax.f32 %v1384, %v1064
    %v1389 = vmax.f32 %v1385, %v1065
    %v1390 = vmax.f32 %v1386, %v1066
    %v1391 = vmax.f32 %v1387, %v1067
    %v1392 = vmax.f32 %v1388, %v1068
    %v1393 = vmax.f32 %v1389, %v1069
    %v1394 = vmax.f32 %v1390, %v1070
    %v1395 = vmax.f32 %v1391, %v1071
    %v1396 = vmax.f32 %v1392, %v1072
    %v1397 = vmax.f32 %v1393, %v1073
    %v1398 = vmax.f32 %v1394, %v1074
    %v1399 = vmax.f32 %v1395, %v1075
    %v1400 = vmax.f32 %v1396, %v1076
    %v1401 = vmax.f32 %v1397, %v1077
    %v1402 = vmax.f32 %v1398, %v1078
    %v1403 = vmax.f32 %v1399, %v1079
    %v1404 = vmax.f32 %v1400, %v1080
    %v1405 = vmax.f32 %v1401, %v1081
    %v1406 = vmax.f32 %v1402, %v1082
    %v1407 = vmax.f32 %v1403, %v1083
    %v1408 = vmax.f32 %v1404, %v1084
    %v1409 = vmax.f32 %v1405, %v1085
    %v1410 = vmax.f32 %v1406, %v1086
    %v1411 = vmax.f32 %v1407, %v1087
    %v1412 = vmax.f32 %v1408, %v1088
    %v1413 = vmax.f32 %v1409, %v1089
    %v1414 = vmax.f32 %v1410, %v1090
    %v1415 = vmax.f32 %v1411, %v1091
    %v1416 = vmax.f32 %v1412, %v1092
    %v1417 = vmax.f32 %v1413, %v1093
    %v1418 = vmax.f32 %v1414, %v1094
    %v1419 = vmax.f32 %v1415, %v1095
    %v1420 = vmax.f32 %v1416, %v1096
    %v1421 = vmax.f32 %v1417, %v1097
    %v1422 = vmax.f32 %v1418, %v1098
    %v1423 = vmax.f32 %v1419, %v1099
    %v1424 = vmax.f32 %v1420, %v1100
    %v1425 = vmax.f32 %v1421, %v1101
    %v1426 = vmax.f32 %v1422, %v1102
    %v1427 = vmax.f32 %v1423, %v1103
    %v1428 = vmax.f32 %v1424, %v1425
    %v1429 = vmax.f32 %v1426, %v1427
    %v1430 = vmax.f32 %v1428, %v1429
    %1431 = vmax.xlane.f32.xlu0 %v1430
    %v1432 = vpop.xlane.xlu0 %1431
    %v1433 = vrot.slane %v1432, 4
    %v1434 = vmax.f32 %v1432, %v1433
    %v1435 = vrot.slane %v1434, 2
    %v1436 = vmax.f32 %v1434, %v1435
    %v1437 = vrot.slane %v1436, 1
    %v1438 = vmax.f32 %v1436, %v1437
    %s1439 = vtos %v1438
    %s1440 = sadd.f32 %s1367, %s1439
    %s1441 = scalar_lea.smem [#allocation10], 0
    %1442 = sst [smem:[%s1441]] %s1440
    // Predicated region
    $region30: #{csad_forward.1} parent=1 // pred_check
      _
    $region31: #{csad_forward.1} parent=1 // pred_check_branch
      %1444 = sbr.rel (0) target = $region33
    $region32: #{csad_forward.1} parent=1 // pred_region
      %s1446 = ssub.s32 8192, 8192
      %1447 = vsyncadd [#allocation6], %s1446
      %s1448 = sshll.u32 [#allocation9], 4
      %s1449 = int_to_ptr.vmem [resolvable:$true] %s1448
      %1454 = dma.vmem_to_hbm [thread:$0]  %s1449, 8192, %s6, [#allocation6], 256, 256, 16
    $region33: #{csad_forward.1} parent=1 // pred_fallthru
      _
    // Predicated region
    $region34: #{csad_forward.1} parent=1 // pred_check
      _
    $region35: #{csad_forward.1} parent=1 // pred_check_branch
      %1456 = sbr.rel (0) target = $region37
    $region36: #{csad_forward.1} parent=1 // pred_region
      %s1458 = ssub.s32 16, 16
      %1459 = vsyncadd [#allocation7], %s1458
      %1462 = dma.smem_to_hbm [#allocation10], 16, %s7, [#allocation7]
    $region37: #{csad_forward.1} parent=1 // pred_fallthru
      _
    // Predicated region
    $region38: #{csad_forward.1} parent=1 // pred_check
      _
    $region39: #{csad_forward.1} parent=1 // pred_check_branch
      %1464 = sbr.rel (0) target = $region41
    $region40: #{csad_forward.1} parent=1 // pred_region
      %1465 = dma.done [#allocation6], 8192
    $region41: #{csad_forward.1} parent=1 // pred_fallthru
      _
    // Predicated region
    $region42: #{csad_forward.1} parent=1 // pred_check
      _
    $region43: #{csad_forward.1} parent=1 // pred_check_branch
      %1467 = sbr.rel (0) target = $region45
    $region44: #{csad_forward.1} parent=1 // pred_region
      %1468 = dma.done [#allocation7], 16
    $region45: #{csad_forward.1} parent=1 // pred_fallthru
      _
    %1469 = sfence
    %1470 = vsyncpa [#allocation6], 1
    %1471 = vsyncpa [#allocation7], 1
    %1472 = vsyncpa [#allocation8], 1
  %1473 = vsyncmov [#allocation4]
  %s1474 = vpop.sfrf %1473
  %p1475 = scmp.eq.s32.totalorder %s1474, 0
  %p1476 = pneg %p1475
  %1478 = shalt.err (%p1476)

</llo_original>
